<compile_context>
chip_gen: v5e
topology: v5e:2x2
jax: 0.10.0
libtpu: 0.0.40
codegen_flags: <defaults>
</compile_context>

<pallas_src>
import functools

import jax
import jax.numpy as jnp
from jax import lax
from jax.experimental import pallas as pl
from jax.experimental.pallas import tpu as pltpu

KSIZE = 7
PAD = 3            # padding = 3 for kernel_size = 7
CCHUNK = 8         # channels reduced per chunk in the streamed path
CSTREAM_MIN = 64   # switch to the fori_loop streamed reduce above this C


def _round_up(x, m):
    return (x + m - 1) // m * m


def _tree_sum(vals):
    """Balanced-tree sum of a list of arrays (keeps FMA chains short)."""
    vals = list(vals)
    while len(vals) > 1:
        nxt = [vals[i] + vals[i + 1] for i in range(0, len(vals) - 1, 2)]
        if len(vals) % 2:
            nxt.append(vals[-1])
        vals = nxt
    return vals[0]


def spatial_attention_kernel(w_ref, x_ref, o_ref, *, img_w):
    # w_ref : SMEM (2*KSIZE*KSIZE,)  flattened conv weights, order [c, kh, kw]
    # x_ref : VMEM (tb, C, H*W)      lane-dense input block
    # o_ref : VMEM (tb, 1, H*W)      lane-dense output block
    tb, ch, hw = x_ref.shape
    n_maps = 2 * tb
    # flat frame: maps at lanes [0, hw); >= PAD*(W+1) trailing zero lanes so
    # every out-of-image row tap (after the circular roll) reads exact zeros.
    fext = _round_up(PAD * (img_w + 1), 128)
    fpad = hw + fext

    # ---- channel reduction (mean + max), lane-dense over flattened H*W ----
    if ch >= CSTREAM_MIN:
        # stream C in chunks with a fori_loop to bound live vregs (big C).
        nfull = ch // CCHUNK
        rem = ch - nfull * CCHUNK

        def body(i, carry):
            s, m = carry
            c0 = pl.multiple_of(i * CCHUNK, CCHUNK)
            xc = x_ref[:, pl.ds(c0, CCHUNK), :].astype(jnp.float32)
            return s + jnp.sum(xc, axis=1), jnp.maximum(m, jnp.max(xc, axis=1))

        ssum = jnp.zeros((tb, hw), jnp.float32)
        smax = jnp.full((tb, hw), -jnp.inf, jnp.float32)
        ssum, smax = lax.fori_loop(0, nfull, body, (ssum, smax), unroll=2)
        if rem:
            xc = x_ref[:, nfull * CCHUNK:, :].astype(jnp.float32)
            ssum = ssum + jnp.sum(xc, axis=1)
            smax = jnp.maximum(smax, jnp.max(xc, axis=1))
    else:
        xall = x_ref[...].astype(jnp.float32)        # (tb, C, HW)
        ssum = jnp.sum(xall, axis=1)                 # (tb, HW)
        smax = jnp.max(xall, axis=1)                 # (tb, HW)
    avg = ssum * (1.0 / ch)

    # ---- pack [avg rows | max rows] along sublanes, extend lanes w/ zeros ----
    maps = jnp.concatenate([avg, smax], axis=0)                       # (2tb, HW)
    frame = jnp.concatenate(
        [maps, jnp.zeros((n_maps, fext), jnp.float32)], axis=1)       # (2tb, FPAD)

    # rows [0:tb] use channel-0 (avg) weights, rows [tb:2tb] channel-1 (max).
    row_is_avg = lax.broadcasted_iota(jnp.int32, (n_maps, 1), 0) < tb
    # per-output-pixel column index (for the per-kw validity masks).
    col = lax.broadcasted_iota(jnp.int32, (n_maps, hw), 1) % img_w

    # ---- 7x7 conv: one static lane roll + one FMA per tap (XLU + VPU) ----
    contribs = []
    for kw in range(KSIZE):
        part_e = jnp.zeros((n_maps, hw), jnp.float32)
        part_o = jnp.zeros((n_maps, hw), jnp.float32)
        for kh in range(KSIZE):
            w0 = w_ref[kh * KSIZE + kw]                   # avg-channel weight
            w1 = w_ref[KSIZE * KSIZE + kh * KSIZE + kw]   # max-channel weight
            wv = jnp.where(row_is_avg, w0, w1)            # (2tb, 1)
            shift = ((PAD - kh) * img_w + (PAD - kw)) % fpad
            rolled = frame if shift == 0 else pltpu.roll(frame, shift, axis=1)
            tap = wv * rolled[:, 0:hw]
            if kh % 2 == 0:
                part_e = part_e + tap
            else:
                part_o = part_o + tap
        part = part_e + part_o
        if kw != PAD:
            # zero the columns whose horizontal tap falls outside the image
            # (these flat-roll positions would otherwise read the next row).
            mask = (col >= PAD - kw) & (col < img_w + PAD - kw)
            part = jnp.where(mask, part, 0.0)
        contribs.append(part)
    acc = _tree_sum(contribs)                             # (2tb, HW)

    out2d = jax.nn.sigmoid(acc[0:tb, :] + acc[tb:2 * tb, :]).astype(o_ref.dtype)
    for b in range(tb):                                   # tb <= 8, tiny
        o_ref[b, 0:1, :] = out2d[b:b + 1, :]


def spatial_attention(x, weight):
    """x: (N, C, H, W); weight: (1, 2, 7, 7) float32."""
    n, c, h, w = x.shape
    assert weight.shape == (1, 2, KSIZE, KSIZE)
    hw = h * w
    fext = _round_up(PAD * (w + 1), 128)
    fpad = hw + fext
    itemsize = jnp.dtype(x.dtype).itemsize

    # --- batch-tile / grid selection: keep >= 4 (>= 2 for tiny N) pipelined
    #     steps so both v7x TCs get work and DMA overlaps compute, with at
    #     most ~2 MiB of input per step and <= 8 batch elems per tile.
    bytes_per_b_in = _round_up(c, 8) * _round_up(hw, 128) * itemsize   # tiled
    min_steps = 4 if n >= 4 else (2 if n >= 2 else 1)
    tb = max(1, min(n // min_steps if n >= min_steps else 1,
                    (2 << 20) // max(bytes_per_b_in, 1),
                    8))
    n_pad = _round_up(n, tb)
    grid = (n_pad // tb,)

    # --- generation-aware VMEM limit from the real (8,128)-tiled footprint ---
    in_block = tb * bytes_per_b_in                                  # per buffer
    out_block = tb * 8 * _round_up(hw, 128) * itemsize              # (tb,1,HW)
    frame_bytes = _round_up(2 * tb, 8) * _round_up(fpad, 128) * 4
    vmem_needed = 2 * in_block + 2 * out_block + 24 * frame_bytes + (2 << 20)
    try:
        cap = int(getattr(pltpu.get_tpu_info(), "vmem_capacity_bytes", 64 << 20))
    except Exception:  # pragma: no cover - conservative fallback
        cap = 64 << 20
    vmem_limit = int(min(max(vmem_needed, 4 << 20), (cap * 3) // 4, 96 << 20))

    # lane-dense layouts for the DMA / reduce / output store.
    x_flat = x.reshape(n, c, hw)
    if n_pad != n:                                   # tail handling: pad batch
        x_flat = jnp.pad(x_flat, ((0, n_pad - n), (0, 0), (0, 0)))
    w_flat = weight.reshape(-1).astype(jnp.float32)  # (2*7*7,) SMEM scalars

    kernel = functools.partial(spatial_attention_kernel, img_w=w)
    out = pl.pallas_call(
        kernel,
        out_shape=jax.ShapeDtypeStruct((n_pad, 1, hw), x.dtype),
        grid=grid,
        in_specs=[
            pl.BlockSpec(memory_space=pltpu.MemorySpace.SMEM),      # weights
            pl.BlockSpec((tb, c, hw), lambda i: (i, 0, 0)),         # x
        ],
        out_specs=pl.BlockSpec((tb, 1, hw), lambda i: (i, 0, 0)),
        compiler_params=pltpu.CompilerParams(
            dimension_semantics=("parallel",),
            vmem_limit_bytes=vmem_limit),
    )(w_flat, x_flat)
    return out[:n].reshape(n, 1, h, w)


def spatial_attention_reference(x, weight):
    # Pure-JAX reference matching the PyTorch forward exactly.
    avg = jnp.mean(x, axis=1, keepdims=True)
    mx = jnp.max(x, axis=1, keepdims=True)
    xc = jnp.concatenate([avg, mx], axis=1)
    out = lax.conv_general_dilated(
        xc, weight, window_strides=(1, 1),
        padding=((PAD, PAD), (PAD, PAD)),
        dimension_numbers=("NCHW", "OIHW", "NCHW"))
    return jax.nn.sigmoid(out)


if __name__ == "__main__":
    key = jax.random.PRNGKey(0)
    kx, kw_key = jax.random.split(key)

    N, C, H, W = 2, 4, 16, 16
    x = jax.random.normal(kx, (N, C, H, W), dtype=jnp.float32)

    # Deterministic conv weight init (kaiming-uniform-like), shape (1, 2, 7, 7)
    fan_in = 2 * KSIZE * KSIZE
    bound = 1.0 / (fan_in ** 0.5)
    weight = jax.random.uniform(
        kw_key, (1, 2, KSIZE, KSIZE), dtype=jnp.float32,
        minval=-bound, maxval=bound)

    out = spatial_attention(x, weight)
    out = jax.block_until_ready(out)

    ref = spatial_attention_reference(x, weight)
    assert out.shape == (N, 1, H, W), out.shape
    if not jnp.allclose(out, ref, atol=1e-5, rtol=1e-5):
        raise AssertionError("Pallas output does not match reference")

    print("KERNEL_OK")
</pallas_src>

<mosaic_0001>
module attributes {stable_mosaic.version = 11 : i64} {
  func.func @spatial_attention_kernel(%arg0: i32, %arg1: memref<98xf32, #tpu.memory_space<smem>>, %arg2: memref<1x4x256xf32, #tpu.memory_space<vmem>>, %arg3: memref<1x1x256xf32, #tpu.memory_space<vmem>>) attributes {dimension_semantics = [#tpu.dimension_semantics<parallel>], iteration_bounds = array<i64: 2>, scalar_prefetch = 0 : i64, scratch_operands = 0 : i64, tpu.core_type = #tpu.core_type<tc>, window_params = [{transform_indices = @transform_0, window_bounds = array<i64: 98>}, {transform_indices = @transform_1, window_bounds = array<i64: 1, 4, 256>}, {transform_indices = @transform_2, window_bounds = array<i64: 1, 1, 256>}]} {
    %c0 = arith.constant 0 : index
    %c0_0 = arith.constant 0 : index
    %c0_1 = arith.constant 0 : index
    %0 = vector.load %arg2[%c0, %c0_0, %c0_1] : memref<1x4x256xf32, #tpu.memory_space<vmem>>, vector<1x4x256xf32>
    %cst = arith.constant dense<0.000000e+00> : vector<1x256xf32>
    %1 = vector.multi_reduction <add>, %0, %cst [1] : vector<1x4x256xf32> to vector<1x256xf32>
    %cst_2 = arith.constant dense<0xFF800000> : vector<1x256xf32>
    %2 = vector.multi_reduction <maximumf>, %0, %cst_2 [1] : vector<1x4x256xf32> to vector<1x256xf32>
    %cst_3 = arith.constant 2.500000e-01 : f32
    %3 = vector.broadcast %cst_3 : f32 to vector<1x256xf32>
    %4 = arith.mulf %1, %3 : vector<1x256xf32>
    %5 = tpu.concatenate %4, %2 in 0 : vector<1x256xf32>, vector<1x256xf32> -> vector<2x256xf32>
    %cst_4 = arith.constant 0.000000e+00 : f32
    %6 = vector.broadcast %cst_4 : f32 to vector<2x128xf32>
    %7 = tpu.concatenate %5, %6 in 1 : vector<2x256xf32>, vector<2x128xf32> -> vector<2x384xf32>
    %8 = tpu.iota {dimensions = array<i32: 0>} : vector<2x1xi32>
    %c1_i32 = arith.constant 1 : i32
    %9 = vector.broadcast %c1_i32 : i32 to vector<2x1xi32>
    %10 = arith.cmpi slt, %8, %9 : vector<2x1xi32>
    %11 = tpu.iota {dimensions = array<i32: 1>} : vector<2x256xi32>
    %c16_i32 = arith.constant 16 : i32
    %c0_i32 = arith.constant 0 : i32
    %12 = arith.cmpi eq, %c16_i32, %c0_i32 : i32
    %c1_i32_5 = arith.constant 1 : i32
    %13 = arith.select %12, %c1_i32_5, %c16_i32 : i32
    %14 = vector.broadcast %13 : i32 to vector<2x256xi32>
    %15 = arith.remsi %11, %14 : vector<2x256xi32>
    %c0_i32_6 = arith.constant 0 : i32
    %16 = vector.broadcast %c0_i32_6 : i32 to vector<2x256xi32>
    %17 = arith.cmpi ne, %15, %16 : vector<2x256xi32>
    %c0_i32_7 = arith.constant 0 : i32
    %18 = vector.broadcast %c0_i32_7 : i32 to vector<2x256xi32>
    %19 = arith.cmpi slt, %15, %18 : vector<2x256xi32>
    %c0_i32_8 = arith.constant 0 : i32
    %20 = arith.cmpi slt, %13, %c0_i32_8 : i32
    %21 = vector.broadcast %20 : i1 to vector<2x256xi1>
    %22 = vector.broadcast %21 : vector<2x256xi1> to vector<2x256xi1>
    %23 = arith.xori %19, %22 : vector<2x256xi1>
    %24 = arith.andi %23, %17 : vector<2x256xi1>
    %25 = vector.broadcast %13 : i32 to vector<2x256xi32>
    %26 = arith.addi %15, %25 : vector<2x256xi32>
    %27 = arith.select %24, %26, %15 : vector<2x256xi1>, vector<2x256xi32>
    %cst_9 = arith.constant 0.000000e+00 : f32
    %28 = vector.broadcast %cst_9 : f32 to vector<2x256xf32>
    %cst_10 = arith.constant 0.000000e+00 : f32
    %29 = vector.broadcast %cst_10 : f32 to vector<2x256xf32>
    %c0_11 = arith.constant 0 : index
    %30 = memref.load %arg1[%c0_11] : memref<98xf32, #tpu.memory_space<smem>>
    %c49 = arith.constant 49 : index
    %31 = memref.load %arg1[%c49] : memref<98xf32, #tpu.memory_space<smem>>
    %32 = vector.broadcast %30 : f32 to vector<2x1xf32>
    %33 = vector.broadcast %31 : f32 to vector<2x1xf32>
    %34 = arith.select %10, %32, %33 : vector<2x1xi1>, vector<2x1xf32>
    %c51_i32 = arith.constant 51 : i32
    %35 = tpu.dynamic_rotate %7 by %c51_i32 dim 1 : vector<2x384xf32>, i32 -> vector<2x384xf32>
    %36 = vector.extract_strided_slice %35 {offsets = [0, 0], sizes = [2, 256], strides = [1, 1]} : vector<2x384xf32> to vector<2x256xf32>
    %37 = vector.broadcast %34 : vector<2x1xf32> to vector<2x256xf32>
    %38 = arith.mulf %37, %36 : vector<2x256xf32>
    %39 = arith.addf %28, %38 : vector<2x256xf32>
    %c7 = arith.constant 7 : index
    %40 = memref.load %arg1[%c7] : memref<98xf32, #tpu.memory_space<smem>>
    %c56 = arith.constant 56 : index
    %41 = memref.load %arg1[%c56] : memref<98xf32, #tpu.memory_space<smem>>
    %42 = vector.broadcast %40 : f32 to vector<2x1xf32>
    %43 = vector.broadcast %41 : f32 to vector<2x1xf32>
    %44 = arith.select %10, %42, %43 : vector<2x1xi1>, vector<2x1xf32>
    %c35_i32 = arith.constant 35 : i32
    %45 = tpu.dynamic_rotate %7 by %c35_i32 dim 1 : vector<2x384xf32>, i32 -> vector<2x384xf32>
    %46 = vector.extract_strided_slice %45 {offsets = [0, 0], sizes = [2, 256], strides = [1, 1]} : vector<2x384xf32> to vector<2x256xf32>
    %47 = vector.broadcast %44 : vector<2x1xf32> to vector<2x256xf32>
    %48 = arith.mulf %47, %46 : vector<2x256xf32>
    %49 = arith.addf %29, %48 : vector<2x256xf32>
    %c14 = arith.constant 14 : index
    %50 = memref.load %arg1[%c14] : memref<98xf32, #tpu.memory_space<smem>>
    %c63 = arith.constant 63 : index
    %51 = memref.load %arg1[%c63] : memref<98xf32, #tpu.memory_space<smem>>
    %52 = vector.broadcast %50 : f32 to vector<2x1xf32>
    %53 = vector.broadcast %51 : f32 to vector<2x1xf32>
    %54 = arith.select %10, %52, %53 : vector<2x1xi1>, vector<2x1xf32>
    %c19_i32 = arith.constant 19 : i32
    %55 = tpu.dynamic_rotate %7 by %c19_i32 dim 1 : vector<2x384xf32>, i32 -> vector<2x384xf32>
    %56 = vector.extract_strided_slice %55 {offsets = [0, 0], sizes = [2, 256], strides = [1, 1]} : vector<2x384xf32> to vector<2x256xf32>
    %57 = vector.broadcast %54 : vector<2x1xf32> to vector<2x256xf32>
    %58 = arith.mulf %57, %56 : vector<2x256xf32>
    %59 = arith.addf %39, %58 : vector<2x256xf32>
    %c21 = arith.constant 21 : index
    %60 = memref.load %arg1[%c21] : memref<98xf32, #tpu.memory_space<smem>>
    %c70 = arith.constant 70 : index
    %61 = memref.load %arg1[%c70] : memref<98xf32, #tpu.memory_space<smem>>
    %62 = vector.broadcast %60 : f32 to vector<2x1xf32>
    %63 = vector.broadcast %61 : f32 to vector<2x1xf32>
    %64 = arith.select %10, %62, %63 : vector<2x1xi1>, vector<2x1xf32>
    %c3_i32 = arith.constant 3 : i32
    %65 = tpu.dynamic_rotate %7 by %c3_i32 dim 1 : vector<2x384xf32>, i32 -> vector<2x384xf32>
    %66 = vector.extract_strided_slice %65 {offsets = [0, 0], sizes = [2, 256], strides = [1, 1]} : vector<2x384xf32> to vector<2x256xf32>
    %67 = vector.broadcast %64 : vector<2x1xf32> to vector<2x256xf32>
    %68 = arith.mulf %67, %66 : vector<2x256xf32>
    %69 = arith.addf %49, %68 : vector<2x256xf32>
    %c28 = arith.constant 28 : index
    %70 = memref.load %arg1[%c28] : memref<98xf32, #tpu.memory_space<smem>>
    %c77 = arith.constant 77 : index
    %71 = memref.load %arg1[%c77] : memref<98xf32, #tpu.memory_space<smem>>
    %72 = vector.broadcast %70 : f32 to vector<2x1xf32>
    %73 = vector.broadcast %71 : f32 to vector<2x1xf32>
    %74 = arith.select %10, %72, %73 : vector<2x1xi1>, vector<2x1xf32>
    %c371_i32 = arith.constant 371 : i32
    %75 = tpu.dynamic_rotate %7 by %c371_i32 dim 1 : vector<2x384xf32>, i32 -> vector<2x384xf32>
    %76 = vector.extract_strided_slice %75 {offsets = [0, 0], sizes = [2, 256], strides = [1, 1]} : vector<2x384xf32> to vector<2x256xf32>
    %77 = vector.broadcast %74 : vector<2x1xf32> to vector<2x256xf32>
    %78 = arith.mulf %77, %76 : vector<2x256xf32>
    %79 = arith.addf %59, %78 : vector<2x256xf32>
    %c35 = arith.constant 35 : index
    %80 = memref.load %arg1[%c35] : memref<98xf32, #tpu.memory_space<smem>>
    %c84 = arith.constant 84 : index
    %81 = memref.load %arg1[%c84] : memref<98xf32, #tpu.memory_space<smem>>
    %82 = vector.broadcast %80 : f32 to vector<2x1xf32>
    %83 = vector.broadcast %81 : f32 to vector<2x1xf32>
    %84 = arith.select %10, %82, %83 : vector<2x1xi1>, vector<2x1xf32>
    %c355_i32 = arith.constant 355 : i32
    %85 = tpu.dynamic_rotate %7 by %c355_i32 dim 1 : vector<2x384xf32>, i32 -> vector<2x384xf32>
    %86 = vector.extract_strided_slice %85 {offsets = [0, 0], sizes = [2, 256], strides = [1, 1]} : vector<2x384xf32> to vector<2x256xf32>
    %87 = vector.broadcast %84 : vector<2x1xf32> to vector<2x256xf32>
    %88 = arith.mulf %87, %86 : vector<2x256xf32>
    %89 = arith.addf %69, %88 : vector<2x256xf32>
    %c42 = arith.constant 42 : index
    %90 = memref.load %arg1[%c42] : memref<98xf32, #tpu.memory_space<smem>>
    %c91 = arith.constant 91 : index
    %91 = memref.load %arg1[%c91] : memref<98xf32, #tpu.memory_space<smem>>
    %92 = vector.broadcast %90 : f32 to vector<2x1xf32>
    %93 = vector.broadcast %91 : f32 to vector<2x1xf32>
    %94 = arith.select %10, %92, %93 : vector<2x1xi1>, vector<2x1xf32>
    %c339_i32 = arith.constant 339 : i32
    %95 = tpu.dynamic_rotate %7 by %c339_i32 dim 1 : vector<2x384xf32>, i32 -> vector<2x384xf32>
    %96 = vector.extract_strided_slice %95 {offsets = [0, 0], sizes = [2, 256], strides = [1, 1]} : vector<2x384xf32> to vector<2x256xf32>
    %97 = vector.broadcast %94 : vector<2x1xf32> to vector<2x256xf32>
    %98 = arith.mulf %97, %96 : vector<2x256xf32>
    %99 = arith.addf %79, %98 : vector<2x256xf32>
    %100 = arith.addf %99, %89 : vector<2x256xf32>
    %c3_i32_12 = arith.constant 3 : i32
    %101 = vector.broadcast %c3_i32_12 : i32 to vector<2x256xi32>
    %102 = arith.cmpi sge, %27, %101 : vector<2x256xi32>
    %c19_i32_13 = arith.constant 19 : i32
    %103 = vector.broadcast %c19_i32_13 : i32 to vector<2x256xi32>
    %104 = arith.cmpi slt, %27, %103 : vector<2x256xi32>
    %105 = arith.andi %102, %104 : vector<2x256xi1>
    %cst_14 = arith.constant 0.000000e+00 : f32
    %106 = vector.broadcast %cst_14 : f32 to vector<2x256xf32>
    %107 = arith.select %105, %100, %106 : vector<2x256xi1>, vector<2x256xf32>
    %cst_15 = arith.constant 0.000000e+00 : f32
    %108 = vector.broadcast %cst_15 : f32 to vector<2x256xf32>
    %cst_16 = arith.constant 0.000000e+00 : f32
    %109 = vector.broadcast %cst_16 : f32 to vector<2x256xf32>
    %c1 = arith.constant 1 : index
    %110 = memref.load %arg1[%c1] : memref<98xf32, #tpu.memory_space<smem>>
    %c50 = arith.constant 50 : index
    %111 = memref.load %arg1[%c50] : memref<98xf32, #tpu.memory_space<smem>>
    %112 = vector.broadcast %110 : f32 to vector<2x1xf32>
    %113 = vector.broadcast %111 : f32 to vector<2x1xf32>
    %114 = arith.select %10, %112, %113 : vector<2x1xi1>, vector<2x1xf32>
    %c50_i32 = arith.constant 50 : i32
    %115 = tpu.dynamic_rotate %7 by %c50_i32 dim 1 : vector<2x384xf32>, i32 -> vector<2x384xf32>
    %116 = vector.extract_strided_slice %115 {offsets = [0, 0], sizes = [2, 256], strides = [1, 1]} : vector<2x384xf32> to vector<2x256xf32>
    %117 = vector.broadcast %114 : vector<2x1xf32> to vector<2x256xf32>
    %118 = arith.mulf %117, %116 : vector<2x256xf32>
    %119 = arith.addf %108, %118 : vector<2x256xf32>
    %c8 = arith.constant 8 : index
    %120 = memref.load %arg1[%c8] : memref<98xf32, #tpu.memory_space<smem>>
    %c57 = arith.constant 57 : index
    %121 = memref.load %arg1[%c57] : memref<98xf32, #tpu.memory_space<smem>>
    %122 = vector.broadcast %120 : f32 to vector<2x1xf32>
    %123 = vector.broadcast %121 : f32 to vector<2x1xf32>
    %124 = arith.select %10, %122, %123 : vector<2x1xi1>, vector<2x1xf32>
    %c34_i32 = arith.constant 34 : i32
    %125 = tpu.dynamic_rotate %7 by %c34_i32 dim 1 : vector<2x384xf32>, i32 -> vector<2x384xf32>
    %126 = vector.extract_strided_slice %125 {offsets = [0, 0], sizes = [2, 256], strides = [1, 1]} : vector<2x384xf32> to vector<2x256xf32>
    %127 = vector.broadcast %124 : vector<2x1xf32> to vector<2x256xf32>
    %128 = arith.mulf %127, %126 : vector<2x256xf32>
    %129 = arith.addf %109, %128 : vector<2x256xf32>
    %c15 = arith.constant 15 : index
    %130 = memref.load %arg1[%c15] : memref<98xf32, #tpu.memory_space<smem>>
    %c64 = arith.constant 64 : index
    %131 = memref.load %arg1[%c64] : memref<98xf32, #tpu.memory_space<smem>>
    %132 = vector.broadcast %130 : f32 to vector<2x1xf32>
    %133 = vector.broadcast %131 : f32 to vector<2x1xf32>
    %134 = arith.select %10, %132, %133 : vector<2x1xi1>, vector<2x1xf32>
    %c18_i32 = arith.constant 18 : i32
    %135 = tpu.dynamic_rotate %7 by %c18_i32 dim 1 : vector<2x384xf32>, i32 -> vector<2x384xf32>
    %136 = vector.extract_strided_slice %135 {offsets = [0, 0], sizes = [2, 256], strides = [1, 1]} : vector<2x384xf32> to vector<2x256xf32>
    %137 = vector.broadcast %134 : vector<2x1xf32> to vector<2x256xf32>
    %138 = arith.mulf %137, %136 : vector<2x256xf32>
    %139 = arith.addf %119, %138 : vector<2x256xf32>
    %c22 = arith.constant 22 : index
    %140 = memref.load %arg1[%c22] : memref<98xf32, #tpu.memory_space<smem>>
    %c71 = arith.constant 71 : index
    %141 = memref.load %arg1[%c71] : memref<98xf32, #tpu.memory_space<smem>>
    %142 = vector.broadcast %140 : f32 to vector<2x1xf32>
    %143 = vector.broadcast %141 : f32 to vector<2x1xf32>
    %144 = arith.select %10, %142, %143 : vector<2x1xi1>, vector<2x1xf32>
    %c2_i32 = arith.constant 2 : i32
    %145 = tpu.dynamic_rotate %7 by %c2_i32 dim 1 : vector<2x384xf32>, i32 -> vector<2x384xf32>
    %146 = vector.extract_strided_slice %145 {offsets = [0, 0], sizes = [2, 256], strides = [1, 1]} : vector<2x384xf32> to vector<2x256xf32>
    %147 = vector.broadcast %144 : vector<2x1xf32> to vector<2x256xf32>
    %148 = arith.mulf %147, %146 : vector<2x256xf32>
    %149 = arith.addf %129, %148 : vector<2x256xf32>
    %c29 = arith.constant 29 : index
    %150 = memref.load %arg1[%c29] : memref<98xf32, #tpu.memory_space<smem>>
    %c78 = arith.constant 78 : index
    %151 = memref.load %arg1[%c78] : memref<98xf32, #tpu.memory_space<smem>>
    %152 = vector.broadcast %150 : f32 to vector<2x1xf32>
    %153 = vector.broadcast %151 : f32 to vector<2x1xf32>
    %154 = arith.select %10, %152, %153 : vector<2x1xi1>, vector<2x1xf32>
    %c370_i32 = arith.constant 370 : i32
    %155 = tpu.dynamic_rotate %7 by %c370_i32 dim 1 : vector<2x384xf32>, i32 -> vector<2x384xf32>
    %156 = vector.extract_strided_slice %155 {offsets = [0, 0], sizes = [2, 256], strides = [1, 1]} : vector<2x384xf32> to vector<2x256xf32>
    %157 = vector.broadcast %154 : vector<2x1xf32> to vector<2x256xf32>
    %158 = arith.mulf %157, %156 : vector<2x256xf32>
    %159 = arith.addf %139, %158 : vector<2x256xf32>
    %c36 = arith.constant 36 : index
    %160 = memref.load %arg1[%c36] : memref<98xf32, #tpu.memory_space<smem>>
    %c85 = arith.constant 85 : index
    %161 = memref.load %arg1[%c85] : memref<98xf32, #tpu.memory_space<smem>>
    %162 = vector.broadcast %160 : f32 to vector<2x1xf32>
    %163 = vector.broadcast %161 : f32 to vector<2x1xf32>
    %164 = arith.select %10, %162, %163 : vector<2x1xi1>, vector<2x1xf32>
    %c354_i32 = arith.constant 354 : i32
    %165 = tpu.dynamic_rotate %7 by %c354_i32 dim 1 : vector<2x384xf32>, i32 -> vector<2x384xf32>
    %166 = vector.extract_strided_slice %165 {offsets = [0, 0], sizes = [2, 256], strides = [1, 1]} : vector<2x384xf32> to vector<2x256xf32>
    %167 = vector.broadcast %164 : vector<2x1xf32> to vector<2x256xf32>
    %168 = arith.mulf %167, %166 : vector<2x256xf32>
    %169 = arith.addf %149, %168 : vector<2x256xf32>
    %c43 = arith.constant 43 : index
    %170 = memref.load %arg1[%c43] : memref<98xf32, #tpu.memory_space<smem>>
    %c92 = arith.constant 92 : index
    %171 = memref.load %arg1[%c92] : memref<98xf32, #tpu.memory_space<smem>>
    %172 = vector.broadcast %170 : f32 to vector<2x1xf32>
    %173 = vector.broadcast %171 : f32 to vector<2x1xf32>
    %174 = arith.select %10, %172, %173 : vector<2x1xi1>, vector<2x1xf32>
    %c338_i32 = arith.constant 338 : i32
    %175 = tpu.dynamic_rotate %7 by %c338_i32 dim 1 : vector<2x384xf32>, i32 -> vector<2x384xf32>
    %176 = vector.extract_strided_slice %175 {offsets = [0, 0], sizes = [2, 256], strides = [1, 1]} : vector<2x384xf32> to vector<2x256xf32>
    %177 = vector.broadcast %174 : vector<2x1xf32> to vector<2x256xf32>
    %178 = arith.mulf %177, %176 : vector<2x256xf32>
    %179 = arith.addf %159, %178 : vector<2x256xf32>
    %180 = arith.addf %179, %169 : vector<2x256xf32>
    %c2_i32_17 = arith.constant 2 : i32
    %181 = vector.broadcast %c2_i32_17 : i32 to vector<2x256xi32>
    %182 = arith.cmpi sge, %27, %181 : vector<2x256xi32>
    %c18_i32_18 = arith.constant 18 : i32
    %183 = vector.broadcast %c18_i32_18 : i32 to vector<2x256xi32>
    %184 = arith.cmpi slt, %27, %183 : vector<2x256xi32>
    %185 = arith.andi %182, %184 : vector<2x256xi1>
    %cst_19 = arith.constant 0.000000e+00 : f32
    %186 = vector.broadcast %cst_19 : f32 to vector<2x256xf32>
    %187 = arith.select %185, %180, %186 : vector<2x256xi1>, vector<2x256xf32>
    %cst_20 = arith.constant 0.000000e+00 : f32
    %188 = vector.broadcast %cst_20 : f32 to vector<2x256xf32>
    %cst_21 = arith.constant 0.000000e+00 : f32
    %189 = vector.broadcast %cst_21 : f32 to vector<2x256xf32>
    %c2 = arith.constant 2 : index
    %190 = memref.load %arg1[%c2] : memref<98xf32, #tpu.memory_space<smem>>
    %c51 = arith.constant 51 : index
    %191 = memref.load %arg1[%c51] : memref<98xf32, #tpu.memory_space<smem>>
    %192 = vector.broadcast %190 : f32 to vector<2x1xf32>
    %193 = vector.broadcast %191 : f32 to vector<2x1xf32>
    %194 = arith.select %10, %192, %193 : vector<2x1xi1>, vector<2x1xf32>
    %c49_i32 = arith.constant 49 : i32
    %195 = tpu.dynamic_rotate %7 by %c49_i32 dim 1 : vector<2x384xf32>, i32 -> vector<2x384xf32>
    %196 = vector.extract_strided_slice %195 {offsets = [0, 0], sizes = [2, 256], strides = [1, 1]} : vector<2x384xf32> to vector<2x256xf32>
    %197 = vector.broadcast %194 : vector<2x1xf32> to vector<2x256xf32>
    %198 = arith.mulf %197, %196 : vector<2x256xf32>
    %199 = arith.addf %188, %198 : vector<2x256xf32>
    %c9 = arith.constant 9 : index
    %200 = memref.load %arg1[%c9] : memref<98xf32, #tpu.memory_space<smem>>
    %c58 = arith.constant 58 : index
    %201 = memref.load %arg1[%c58] : memref<98xf32, #tpu.memory_space<smem>>
    %202 = vector.broadcast %200 : f32 to vector<2x1xf32>
    %203 = vector.broadcast %201 : f32 to vector<2x1xf32>
    %204 = arith.select %10, %202, %203 : vector<2x1xi1>, vector<2x1xf32>
    %c33_i32 = arith.constant 33 : i32
    %205 = tpu.dynamic_rotate %7 by %c33_i32 dim 1 : vector<2x384xf32>, i32 -> vector<2x384xf32>
    %206 = vector.extract_strided_slice %205 {offsets = [0, 0], sizes = [2, 256], strides = [1, 1]} : vector<2x384xf32> to vector<2x256xf32>
    %207 = vector.broadcast %204 : vector<2x1xf32> to vector<2x256xf32>
    %208 = arith.mulf %207, %206 : vector<2x256xf32>
    %209 = arith.addf %189, %208 : vector<2x256xf32>
    %c16 = arith.constant 16 : index
    %210 = memref.load %arg1[%c16] : memref<98xf32, #tpu.memory_space<smem>>
    %c65 = arith.constant 65 : index
    %211 = memref.load %arg1[%c65] : memref<98xf32, #tpu.memory_space<smem>>
    %212 = vector.broadcast %210 : f32 to vector<2x1xf32>
    %213 = vector.broadcast %211 : f32 to vector<2x1xf32>
    %214 = arith.select %10, %212, %213 : vector<2x1xi1>, vector<2x1xf32>
    %c17_i32 = arith.constant 17 : i32
    %215 = tpu.dynamic_rotate %7 by %c17_i32 dim 1 : vector<2x384xf32>, i32 -> vector<2x384xf32>
    %216 = vector.extract_strided_slice %215 {offsets = [0, 0], sizes = [2, 256], strides = [1, 1]} : vector<2x384xf32> to vector<2x256xf32>
    %217 = vector.broadcast %214 : vector<2x1xf32> to vector<2x256xf32>
    %218 = arith.mulf %217, %216 : vector<2x256xf32>
    %219 = arith.addf %199, %218 : vector<2x256xf32>
    %c23 = arith.constant 23 : index
    %220 = memref.load %arg1[%c23] : memref<98xf32, #tpu.memory_space<smem>>
    %c72 = arith.constant 72 : index
    %221 = memref.load %arg1[%c72] : memref<98xf32, #tpu.memory_space<smem>>
    %222 = vector.broadcast %220 : f32 to vector<2x1xf32>
    %223 = vector.broadcast %221 : f32 to vector<2x1xf32>
    %224 = arith.select %10, %222, %223 : vector<2x1xi1>, vector<2x1xf32>
    %c1_i32_22 = arith.constant 1 : i32
    %225 = tpu.dynamic_rotate %7 by %c1_i32_22 dim 1 : vector<2x384xf32>, i32 -> vector<2x384xf32>
    %226 = vector.extract_strided_slice %225 {offsets = [0, 0], sizes = [2, 256], strides = [1, 1]} : vector<2x384xf32> to vector<2x256xf32>
    %227 = vector.broadcast %224 : vector<2x1xf32> to vector<2x256xf32>
    %228 = arith.mulf %227, %226 : vector<2x256xf32>
    %229 = arith.addf %209, %228 : vector<2x256xf32>
    %c30 = arith.constant 30 : index
    %230 = memref.load %arg1[%c30] : memref<98xf32, #tpu.memory_space<smem>>
    %c79 = arith.constant 79 : index
    %231 = memref.load %arg1[%c79] : memref<98xf32, #tpu.memory_space<smem>>
    %232 = vector.broadcast %230 : f32 to vector<2x1xf32>
    %233 = vector.broadcast %231 : f32 to vector<2x1xf32>
    %234 = arith.select %10, %232, %233 : vector<2x1xi1>, vector<2x1xf32>
    %c369_i32 = arith.constant 369 : i32
    %235 = tpu.dynamic_rotate %7 by %c369_i32 dim 1 : vector<2x384xf32>, i32 -> vector<2x384xf32>
    %236 = vector.extract_strided_slice %235 {offsets = [0, 0], sizes = [2, 256], strides = [1, 1]} : vector<2x384xf32> to vector<2x256xf32>
    %237 = vector.broadcast %234 : vector<2x1xf32> to vector<2x256xf32>
    %238 = arith.mulf %237, %236 : vector<2x256xf32>
    %239 = arith.addf %219, %238 : vector<2x256xf32>
    %c37 = arith.constant 37 : index
    %240 = memref.load %arg1[%c37] : memref<98xf32, #tpu.memory_space<smem>>
    %c86 = arith.constant 86 : index
    %241 = memref.load %arg1[%c86] : memref<98xf32, #tpu.memory_space<smem>>
    %242 = vector.broadcast %240 : f32 to vector<2x1xf32>
    %243 = vector.broadcast %241 : f32 to vector<2x1xf32>
    %244 = arith.select %10, %242, %243 : vector<2x1xi1>, vector<2x1xf32>
    %c353_i32 = arith.constant 353 : i32
    %245 = tpu.dynamic_rotate %7 by %c353_i32 dim 1 : vector<2x384xf32>, i32 -> vector<2x384xf32>
    %246 = vector.extract_strided_slice %245 {offsets = [0, 0], sizes = [2, 256], strides = [1, 1]} : vector<2x384xf32> to vector<2x256xf32>
    %247 = vector.broadcast %244 : vector<2x1xf32> to vector<2x256xf32>
    %248 = arith.mulf %247, %246 : vector<2x256xf32>
    %249 = arith.addf %229, %248 : vector<2x256xf32>
    %c44 = arith.constant 44 : index
    %250 = memref.load %arg1[%c44] : memref<98xf32, #tpu.memory_space<smem>>
    %c93 = arith.constant 93 : index
    %251 = memref.load %arg1[%c93] : memref<98xf32, #tpu.memory_space<smem>>
    %252 = vector.broadcast %250 : f32 to vector<2x1xf32>
    %253 = vector.broadcast %251 : f32 to vector<2x1xf32>
    %254 = arith.select %10, %252, %253 : vector<2x1xi1>, vector<2x1xf32>
    %c337_i32 = arith.constant 337 : i32
    %255 = tpu.dynamic_rotate %7 by %c337_i32 dim 1 : vector<2x384xf32>, i32 -> vector<2x384xf32>
    %256 = vector.extract_strided_slice %255 {offsets = [0, 0], sizes = [2, 256], strides = [1, 1]} : vector<2x384xf32> to vector<2x256xf32>
    %257 = vector.broadcast %254 : vector<2x1xf32> to vector<2x256xf32>
    %258 = arith.mulf %257, %256 : vector<2x256xf32>
    %259 = arith.addf %239, %258 : vector<2x256xf32>
    %260 = arith.addf %259, %249 : vector<2x256xf32>
    %c1_i32_23 = arith.constant 1 : i32
    %261 = vector.broadcast %c1_i32_23 : i32 to vector<2x256xi32>
    %262 = arith.cmpi sge, %27, %261 : vector<2x256xi32>
    %c17_i32_24 = arith.constant 17 : i32
    %263 = vector.broadcast %c17_i32_24 : i32 to vector<2x256xi32>
    %264 = arith.cmpi slt, %27, %263 : vector<2x256xi32>
    %265 = arith.andi %262, %264 : vector<2x256xi1>
    %cst_25 = arith.constant 0.000000e+00 : f32
    %266 = vector.broadcast %cst_25 : f32 to vector<2x256xf32>
    %267 = arith.select %265, %260, %266 : vector<2x256xi1>, vector<2x256xf32>
    %cst_26 = arith.constant 0.000000e+00 : f32
    %268 = vector.broadcast %cst_26 : f32 to vector<2x256xf32>
    %cst_27 = arith.constant 0.000000e+00 : f32
    %269 = vector.broadcast %cst_27 : f32 to vector<2x256xf32>
    %c3 = arith.constant 3 : index
    %270 = memref.load %arg1[%c3] : memref<98xf32, #tpu.memory_space<smem>>
    %c52 = arith.constant 52 : index
    %271 = memref.load %arg1[%c52] : memref<98xf32, #tpu.memory_space<smem>>
    %272 = vector.broadcast %270 : f32 to vector<2x1xf32>
    %273 = vector.broadcast %271 : f32 to vector<2x1xf32>
    %274 = arith.select %10, %272, %273 : vector<2x1xi1>, vector<2x1xf32>
    %c48_i32 = arith.constant 48 : i32
    %275 = tpu.dynamic_rotate %7 by %c48_i32 dim 1 : vector<2x384xf32>, i32 -> vector<2x384xf32>
    %276 = vector.extract_strided_slice %275 {offsets = [0, 0], sizes = [2, 256], strides = [1, 1]} : vector<2x384xf32> to vector<2x256xf32>
    %277 = vector.broadcast %274 : vector<2x1xf32> to vector<2x256xf32>
    %278 = arith.mulf %277, %276 : vector<2x256xf32>
    %279 = arith.addf %268, %278 : vector<2x256xf32>
    %c10 = arith.constant 10 : index
    %280 = memref.load %arg1[%c10] : memref<98xf32, #tpu.memory_space<smem>>
    %c59 = arith.constant 59 : index
    %281 = memref.load %arg1[%c59] : memref<98xf32, #tpu.memory_space<smem>>
    %282 = vector.broadcast %280 : f32 to vector<2x1xf32>
    %283 = vector.broadcast %281 : f32 to vector<2x1xf32>
    %284 = arith.select %10, %282, %283 : vector<2x1xi1>, vector<2x1xf32>
    %c32_i32 = arith.constant 32 : i32
    %285 = tpu.dynamic_rotate %7 by %c32_i32 dim 1 : vector<2x384xf32>, i32 -> vector<2x384xf32>
    %286 = vector.extract_strided_slice %285 {offsets = [0, 0], sizes = [2, 256], strides = [1, 1]} : vector<2x384xf32> to vector<2x256xf32>
    %287 = vector.broadcast %284 : vector<2x1xf32> to vector<2x256xf32>
    %288 = arith.mulf %287, %286 : vector<2x256xf32>
    %289 = arith.addf %269, %288 : vector<2x256xf32>
    %c17 = arith.constant 17 : index
    %290 = memref.load %arg1[%c17] : memref<98xf32, #tpu.memory_space<smem>>
    %c66 = arith.constant 66 : index
    %291 = memref.load %arg1[%c66] : memref<98xf32, #tpu.memory_space<smem>>
    %292 = vector.broadcast %290 : f32 to vector<2x1xf32>
    %293 = vector.broadcast %291 : f32 to vector<2x1xf32>
    %294 = arith.select %10, %292, %293 : vector<2x1xi1>, vector<2x1xf32>
    %c16_i32_28 = arith.constant 16 : i32
    %295 = tpu.dynamic_rotate %7 by %c16_i32_28 dim 1 : vector<2x384xf32>, i32 -> vector<2x384xf32>
    %296 = vector.extract_strided_slice %295 {offsets = [0, 0], sizes = [2, 256], strides = [1, 1]} : vector<2x384xf32> to vector<2x256xf32>
    %297 = vector.broadcast %294 : vector<2x1xf32> to vector<2x256xf32>
    %298 = arith.mulf %297, %296 : vector<2x256xf32>
    %299 = arith.addf %279, %298 : vector<2x256xf32>
    %c24 = arith.constant 24 : index
    %300 = memref.load %arg1[%c24] : memref<98xf32, #tpu.memory_space<smem>>
    %c73 = arith.constant 73 : index
    %301 = memref.load %arg1[%c73] : memref<98xf32, #tpu.memory_space<smem>>
    %302 = vector.broadcast %300 : f32 to vector<2x1xf32>
    %303 = vector.broadcast %301 : f32 to vector<2x1xf32>
    %304 = arith.select %10, %302, %303 : vector<2x1xi1>, vector<2x1xf32>
    %305 = vector.extract_strided_slice %7 {offsets = [0, 0], sizes = [2, 256], strides = [1, 1]} : vector<2x384xf32> to vector<2x256xf32>
    %306 = vector.broadcast %304 : vector<2x1xf32> to vector<2x256xf32>
    %307 = arith.mulf %306, %305 : vector<2x256xf32>
    %308 = arith.addf %289, %307 : vector<2x256xf32>
    %c31 = arith.constant 31 : index
    %309 = memref.load %arg1[%c31] : memref<98xf32, #tpu.memory_space<smem>>
    %c80 = arith.constant 80 : index
    %310 = memref.load %arg1[%c80] : memref<98xf32, #tpu.memory_space<smem>>
    %311 = vector.broadcast %309 : f32 to vector<2x1xf32>
    %312 = vector.broadcast %310 : f32 to vector<2x1xf32>
    %313 = arith.select %10, %311, %312 : vector<2x1xi1>, vector<2x1xf32>
    %c368_i32 = arith.constant 368 : i32
    %314 = tpu.dynamic_rotate %7 by %c368_i32 dim 1 : vector<2x384xf32>, i32 -> vector<2x384xf32>
    %315 = vector.extract_strided_slice %314 {offsets = [0, 0], sizes = [2, 256], strides = [1, 1]} : vector<2x384xf32> to vector<2x256xf32>
    %316 = vector.broadcast %313 : vector<2x1xf32> to vector<2x256xf32>
    %317 = arith.mulf %316, %315 : vector<2x256xf32>
    %318 = arith.addf %299, %317 : vector<2x256xf32>
    %c38 = arith.constant 38 : index
    %319 = memref.load %arg1[%c38] : memref<98xf32, #tpu.memory_space<smem>>
    %c87 = arith.constant 87 : index
    %320 = memref.load %arg1[%c87] : memref<98xf32, #tpu.memory_space<smem>>
    %321 = vector.broadcast %319 : f32 to vector<2x1xf32>
    %322 = vector.broadcast %320 : f32 to vector<2x1xf32>
    %323 = arith.select %10, %321, %322 : vector<2x1xi1>, vector<2x1xf32>
    %c352_i32 = arith.constant 352 : i32
    %324 = tpu.dynamic_rotate %7 by %c352_i32 dim 1 : vector<2x384xf32>, i32 -> vector<2x384xf32>
    %325 = vector.extract_strided_slice %324 {offsets = [0, 0], sizes = [2, 256], strides = [1, 1]} : vector<2x384xf32> to vector<2x256xf32>
    %326 = vector.broadcast %323 : vector<2x1xf32> to vector<2x256xf32>
    %327 = arith.mulf %326, %325 : vector<2x256xf32>
    %328 = arith.addf %308, %327 : vector<2x256xf32>
    %c45 = arith.constant 45 : index
    %329 = memref.load %arg1[%c45] : memref<98xf32, #tpu.memory_space<smem>>
    %c94 = arith.constant 94 : index
    %330 = memref.load %arg1[%c94] : memref<98xf32, #tpu.memory_space<smem>>
    %331 = vector.broadcast %329 : f32 to vector<2x1xf32>
    %332 = vector.broadcast %330 : f32 to vector<2x1xf32>
    %333 = arith.select %10, %331, %332 : vector<2x1xi1>, vector<2x1xf32>
    %c336_i32 = arith.constant 336 : i32
    %334 = tpu.dynamic_rotate %7 by %c336_i32 dim 1 : vector<2x384xf32>, i32 -> vector<2x384xf32>
    %335 = vector.extract_strided_slice %334 {offsets = [0, 0], sizes = [2, 256], strides = [1, 1]} : vector<2x384xf32> to vector<2x256xf32>
    %336 = vector.broadcast %333 : vector<2x1xf32> to vector<2x256xf32>
    %337 = arith.mulf %336, %335 : vector<2x256xf32>
    %338 = arith.addf %318, %337 : vector<2x256xf32>
    %339 = arith.addf %338, %328 : vector<2x256xf32>
    %cst_29 = arith.constant 0.000000e+00 : f32
    %340 = vector.broadcast %cst_29 : f32 to vector<2x256xf32>
    %cst_30 = arith.constant 0.000000e+00 : f32
    %341 = vector.broadcast %cst_30 : f32 to vector<2x256xf32>
    %c4 = arith.constant 4 : index
    %342 = memref.load %arg1[%c4] : memref<98xf32, #tpu.memory_space<smem>>
    %c53 = arith.constant 53 : index
    %343 = memref.load %arg1[%c53] : memref<98xf32, #tpu.memory_space<smem>>
    %344 = vector.broadcast %342 : f32 to vector<2x1xf32>
    %345 = vector.broadcast %343 : f32 to vector<2x1xf32>
    %346 = arith.select %10, %344, %345 : vector<2x1xi1>, vector<2x1xf32>
    %c47_i32 = arith.constant 47 : i32
    %347 = tpu.dynamic_rotate %7 by %c47_i32 dim 1 : vector<2x384xf32>, i32 -> vector<2x384xf32>
    %348 = vector.extract_strided_slice %347 {offsets = [0, 0], sizes = [2, 256], strides = [1, 1]} : vector<2x384xf32> to vector<2x256xf32>
    %349 = vector.broadcast %346 : vector<2x1xf32> to vector<2x256xf32>
    %350 = arith.mulf %349, %348 : vector<2x256xf32>
    %351 = arith.addf %340, %350 : vector<2x256xf32>
    %c11 = arith.constant 11 : index
    %352 = memref.load %arg1[%c11] : memref<98xf32, #tpu.memory_space<smem>>
    %c60 = arith.constant 60 : index
    %353 = memref.load %arg1[%c60] : memref<98xf32, #tpu.memory_space<smem>>
    %354 = vector.broadcast %352 : f32 to vector<2x1xf32>
    %355 = vector.broadcast %353 : f32 to vector<2x1xf32>
    %356 = arith.select %10, %354, %355 : vector<2x1xi1>, vector<2x1xf32>
    %c31_i32 = arith.constant 31 : i32
    %357 = tpu.dynamic_rotate %7 by %c31_i32 dim 1 : vector<2x384xf32>, i32 -> vector<2x384xf32>
    %358 = vector.extract_strided_slice %357 {offsets = [0, 0], sizes = [2, 256], strides = [1, 1]} : vector<2x384xf32> to vector<2x256xf32>
    %359 = vector.broadcast %356 : vector<2x1xf32> to vector<2x256xf32>
    %360 = arith.mulf %359, %358 : vector<2x256xf32>
    %361 = arith.addf %341, %360 : vector<2x256xf32>
    %c18 = arith.constant 18 : index
    %362 = memref.load %arg1[%c18] : memref<98xf32, #tpu.memory_space<smem>>
    %c67 = arith.constant 67 : index
    %363 = memref.load %arg1[%c67] : memref<98xf32, #tpu.memory_space<smem>>
    %364 = vector.broadcast %362 : f32 to vector<2x1xf32>
    %365 = vector.broadcast %363 : f32 to vector<2x1xf32>
    %366 = arith.select %10, %364, %365 : vector<2x1xi1>, vector<2x1xf32>
    %c15_i32 = arith.constant 15 : i32
    %367 = tpu.dynamic_rotate %7 by %c15_i32 dim 1 : vector<2x384xf32>, i32 -> vector<2x384xf32>
    %368 = vector.extract_strided_slice %367 {offsets = [0, 0], sizes = [2, 256], strides = [1, 1]} : vector<2x384xf32> to vector<2x256xf32>
    %369 = vector.broadcast %366 : vector<2x1xf32> to vector<2x256xf32>
    %370 = arith.mulf %369, %368 : vector<2x256xf32>
    %371 = arith.addf %351, %370 : vector<2x256xf32>
    %c25 = arith.constant 25 : index
    %372 = memref.load %arg1[%c25] : memref<98xf32, #tpu.memory_space<smem>>
    %c74 = arith.constant 74 : index
    %373 = memref.load %arg1[%c74] : memref<98xf32, #tpu.memory_space<smem>>
    %374 = vector.broadcast %372 : f32 to vector<2x1xf32>
    %375 = vector.broadcast %373 : f32 to vector<2x1xf32>
    %376 = arith.select %10, %374, %375 : vector<2x1xi1>, vector<2x1xf32>
    %c383_i32 = arith.constant 383 : i32
    %377 = tpu.dynamic_rotate %7 by %c383_i32 dim 1 : vector<2x384xf32>, i32 -> vector<2x384xf32>
    %378 = vector.extract_strided_slice %377 {offsets = [0, 0], sizes = [2, 256], strides = [1, 1]} : vector<2x384xf32> to vector<2x256xf32>
    %379 = vector.broadcast %376 : vector<2x1xf32> to vector<2x256xf32>
    %380 = arith.mulf %379, %378 : vector<2x256xf32>
    %381 = arith.addf %361, %380 : vector<2x256xf32>
    %c32 = arith.constant 32 : index
    %382 = memref.load %arg1[%c32] : memref<98xf32, #tpu.memory_space<smem>>
    %c81 = arith.constant 81 : index
    %383 = memref.load %arg1[%c81] : memref<98xf32, #tpu.memory_space<smem>>
    %384 = vector.broadcast %382 : f32 to vector<2x1xf32>
    %385 = vector.broadcast %383 : f32 to vector<2x1xf32>
    %386 = arith.select %10, %384, %385 : vector<2x1xi1>, vector<2x1xf32>
    %c367_i32 = arith.constant 367 : i32
    %387 = tpu.dynamic_rotate %7 by %c367_i32 dim 1 : vector<2x384xf32>, i32 -> vector<2x384xf32>
    %388 = vector.extract_strided_slice %387 {offsets = [0, 0], sizes = [2, 256], strides = [1, 1]} : vector<2x384xf32> to vector<2x256xf32>
    %389 = vector.broadcast %386 : vector<2x1xf32> to vector<2x256xf32>
    %390 = arith.mulf %389, %388 : vector<2x256xf32>
    %391 = arith.addf %371, %390 : vector<2x256xf32>
    %c39 = arith.constant 39 : index
    %392 = memref.load %arg1[%c39] : memref<98xf32, #tpu.memory_space<smem>>
    %c88 = arith.constant 88 : index
    %393 = memref.load %arg1[%c88] : memref<98xf32, #tpu.memory_space<smem>>
    %394 = vector.broadcast %392 : f32 to vector<2x1xf32>
    %395 = vector.broadcast %393 : f32 to vector<2x1xf32>
    %396 = arith.select %10, %394, %395 : vector<2x1xi1>, vector<2x1xf32>
    %c351_i32 = arith.constant 351 : i32
    %397 = tpu.dynamic_rotate %7 by %c351_i32 dim 1 : vector<2x384xf32>, i32 -> vector<2x384xf32>
    %398 = vector.extract_strided_slice %397 {offsets = [0, 0], sizes = [2, 256], strides = [1, 1]} : vector<2x384xf32> to vector<2x256xf32>
    %399 = vector.broadcast %396 : vector<2x1xf32> to vector<2x256xf32>
    %400 = arith.mulf %399, %398 : vector<2x256xf32>
    %401 = arith.addf %381, %400 : vector<2x256xf32>
    %c46 = arith.constant 46 : index
    %402 = memref.load %arg1[%c46] : memref<98xf32, #tpu.memory_space<smem>>
    %c95 = arith.constant 95 : index
    %403 = memref.load %arg1[%c95] : memref<98xf32, #tpu.memory_space<smem>>
    %404 = vector.broadcast %402 : f32 to vector<2x1xf32>
    %405 = vector.broadcast %403 : f32 to vector<2x1xf32>
    %406 = arith.select %10, %404, %405 : vector<2x1xi1>, vector<2x1xf32>
    %c335_i32 = arith.constant 335 : i32
    %407 = tpu.dynamic_rotate %7 by %c335_i32 dim 1 : vector<2x384xf32>, i32 -> vector<2x384xf32>
    %408 = vector.extract_strided_slice %407 {offsets = [0, 0], sizes = [2, 256], strides = [1, 1]} : vector<2x384xf32> to vector<2x256xf32>
    %409 = vector.broadcast %406 : vector<2x1xf32> to vector<2x256xf32>
    %410 = arith.mulf %409, %408 : vector<2x256xf32>
    %411 = arith.addf %391, %410 : vector<2x256xf32>
    %412 = arith.addf %411, %401 : vector<2x256xf32>
    %c-1_i32 = arith.constant -1 : i32
    %413 = vector.broadcast %c-1_i32 : i32 to vector<2x256xi32>
    %414 = arith.cmpi sge, %27, %413 : vector<2x256xi32>
    %c15_i32_31 = arith.constant 15 : i32
    %415 = vector.broadcast %c15_i32_31 : i32 to vector<2x256xi32>
    %416 = arith.cmpi slt, %27, %415 : vector<2x256xi32>
    %417 = arith.andi %414, %416 : vector<2x256xi1>
    %cst_32 = arith.constant 0.000000e+00 : f32
    %418 = vector.broadcast %cst_32 : f32 to vector<2x256xf32>
    %419 = arith.select %417, %412, %418 : vector<2x256xi1>, vector<2x256xf32>
    %cst_33 = arith.constant 0.000000e+00 : f32
    %420 = vector.broadcast %cst_33 : f32 to vector<2x256xf32>
    %cst_34 = arith.constant 0.000000e+00 : f32
    %421 = vector.broadcast %cst_34 : f32 to vector<2x256xf32>
    %c5 = arith.constant 5 : index
    %422 = memref.load %arg1[%c5] : memref<98xf32, #tpu.memory_space<smem>>
    %c54 = arith.constant 54 : index
    %423 = memref.load %arg1[%c54] : memref<98xf32, #tpu.memory_space<smem>>
    %424 = vector.broadcast %422 : f32 to vector<2x1xf32>
    %425 = vector.broadcast %423 : f32 to vector<2x1xf32>
    %426 = arith.select %10, %424, %425 : vector<2x1xi1>, vector<2x1xf32>
    %c46_i32 = arith.constant 46 : i32
    %427 = tpu.dynamic_rotate %7 by %c46_i32 dim 1 : vector<2x384xf32>, i32 -> vector<2x384xf32>
    %428 = vector.extract_strided_slice %427 {offsets = [0, 0], sizes = [2, 256], strides = [1, 1]} : vector<2x384xf32> to vector<2x256xf32>
    %429 = vector.broadcast %426 : vector<2x1xf32> to vector<2x256xf32>
    %430 = arith.mulf %429, %428 : vector<2x256xf32>
    %431 = arith.addf %420, %430 : vector<2x256xf32>
    %c12 = arith.constant 12 : index
    %432 = memref.load %arg1[%c12] : memref<98xf32, #tpu.memory_space<smem>>
    %c61 = arith.constant 61 : index
    %433 = memref.load %arg1[%c61] : memref<98xf32, #tpu.memory_space<smem>>
    %434 = vector.broadcast %432 : f32 to vector<2x1xf32>
    %435 = vector.broadcast %433 : f32 to vector<2x1xf32>
    %436 = arith.select %10, %434, %435 : vector<2x1xi1>, vector<2x1xf32>
    %c30_i32 = arith.constant 30 : i32
    %437 = tpu.dynamic_rotate %7 by %c30_i32 dim 1 : vector<2x384xf32>, i32 -> vector<2x384xf32>
    %438 = vector.extract_strided_slice %437 {offsets = [0, 0], sizes = [2, 256], strides = [1, 1]} : vector<2x384xf32> to vector<2x256xf32>
    %439 = vector.broadcast %436 : vector<2x1xf32> to vector<2x256xf32>
    %440 = arith.mulf %439, %438 : vector<2x256xf32>
    %441 = arith.addf %421, %440 : vector<2x256xf32>
    %c19 = arith.constant 19 : index
    %442 = memref.load %arg1[%c19] : memref<98xf32, #tpu.memory_space<smem>>
    %c68 = arith.constant 68 : index
    %443 = memref.load %arg1[%c68] : memref<98xf32, #tpu.memory_space<smem>>
    %444 = vector.broadcast %442 : f32 to vector<2x1xf32>
    %445 = vector.broadcast %443 : f32 to vector<2x1xf32>
    %446 = arith.select %10, %444, %445 : vector<2x1xi1>, vector<2x1xf32>
    %c14_i32 = arith.constant 14 : i32
    %447 = tpu.dynamic_rotate %7 by %c14_i32 dim 1 : vector<2x384xf32>, i32 -> vector<2x384xf32>
    %448 = vector.extract_strided_slice %447 {offsets = [0, 0], sizes = [2, 256], strides = [1, 1]} : vector<2x384xf32> to vector<2x256xf32>
    %449 = vector.broadcast %446 : vector<2x1xf32> to vector<2x256xf32>
    %450 = arith.mulf %449, %448 : vector<2x256xf32>
    %451 = arith.addf %431, %450 : vector<2x256xf32>
    %c26 = arith.constant 26 : index
    %452 = memref.load %arg1[%c26] : memref<98xf32, #tpu.memory_space<smem>>
    %c75 = arith.constant 75 : index
    %453 = memref.load %arg1[%c75] : memref<98xf32, #tpu.memory_space<smem>>
    %454 = vector.broadcast %452 : f32 to vector<2x1xf32>
    %455 = vector.broadcast %453 : f32 to vector<2x1xf32>
    %456 = arith.select %10, %454, %455 : vector<2x1xi1>, vector<2x1xf32>
    %c382_i32 = arith.constant 382 : i32
    %457 = tpu.dynamic_rotate %7 by %c382_i32 dim 1 : vector<2x384xf32>, i32 -> vector<2x384xf32>
    %458 = vector.extract_strided_slice %457 {offsets = [0, 0], sizes = [2, 256], strides = [1, 1]} : vector<2x384xf32> to vector<2x256xf32>
    %459 = vector.broadcast %456 : vector<2x1xf32> to vector<2x256xf32>
    %460 = arith.mulf %459, %458 : vector<2x256xf32>
    %461 = arith.addf %441, %460 : vector<2x256xf32>
    %c33 = arith.constant 33 : index
    %462 = memref.load %arg1[%c33] : memref<98xf32, #tpu.memory_space<smem>>
    %c82 = arith.constant 82 : index
    %463 = memref.load %arg1[%c82] : memref<98xf32, #tpu.memory_space<smem>>
    %464 = vector.broadcast %462 : f32 to vector<2x1xf32>
    %465 = vector.broadcast %463 : f32 to vector<2x1xf32>
    %466 = arith.select %10, %464, %465 : vector<2x1xi1>, vector<2x1xf32>
    %c366_i32 = arith.constant 366 : i32
    %467 = tpu.dynamic_rotate %7 by %c366_i32 dim 1 : vector<2x384xf32>, i32 -> vector<2x384xf32>
    %468 = vector.extract_strided_slice %467 {offsets = [0, 0], sizes = [2, 256], strides = [1, 1]} : vector<2x384xf32> to vector<2x256xf32>
    %469 = vector.broadcast %466 : vector<2x1xf32> to vector<2x256xf32>
    %470 = arith.mulf %469, %468 : vector<2x256xf32>
    %471 = arith.addf %451, %470 : vector<2x256xf32>
    %c40 = arith.constant 40 : index
    %472 = memref.load %arg1[%c40] : memref<98xf32, #tpu.memory_space<smem>>
    %c89 = arith.constant 89 : index
    %473 = memref.load %arg1[%c89] : memref<98xf32, #tpu.memory_space<smem>>
    %474 = vector.broadcast %472 : f32 to vector<2x1xf32>
    %475 = vector.broadcast %473 : f32 to vector<2x1xf32>
    %476 = arith.select %10, %474, %475 : vector<2x1xi1>, vector<2x1xf32>
    %c350_i32 = arith.constant 350 : i32
    %477 = tpu.dynamic_rotate %7 by %c350_i32 dim 1 : vector<2x384xf32>, i32 -> vector<2x384xf32>
    %478 = vector.extract_strided_slice %477 {offsets = [0, 0], sizes = [2, 256], strides = [1, 1]} : vector<2x384xf32> to vector<2x256xf32>
    %479 = vector.broadcast %476 : vector<2x1xf32> to vector<2x256xf32>
    %480 = arith.mulf %479, %478 : vector<2x256xf32>
    %481 = arith.addf %461, %480 : vector<2x256xf32>
    %c47 = arith.constant 47 : index
    %482 = memref.load %arg1[%c47] : memref<98xf32, #tpu.memory_space<smem>>
    %c96 = arith.constant 96 : index
    %483 = memref.load %arg1[%c96] : memref<98xf32, #tpu.memory_space<smem>>
    %484 = vector.broadcast %482 : f32 to vector<2x1xf32>
    %485 = vector.broadcast %483 : f32 to vector<2x1xf32>
    %486 = arith.select %10, %484, %485 : vector<2x1xi1>, vector<2x1xf32>
    %c334_i32 = arith.constant 334 : i32
    %487 = tpu.dynamic_rotate %7 by %c334_i32 dim 1 : vector<2x384xf32>, i32 -> vector<2x384xf32>
    %488 = vector.extract_strided_slice %487 {offsets = [0, 0], sizes = [2, 256], strides = [1, 1]} : vector<2x384xf32> to vector<2x256xf32>
    %489 = vector.broadcast %486 : vector<2x1xf32> to vector<2x256xf32>
    %490 = arith.mulf %489, %488 : vector<2x256xf32>
    %491 = arith.addf %471, %490 : vector<2x256xf32>
    %492 = arith.addf %491, %481 : vector<2x256xf32>
    %c-2_i32 = arith.constant -2 : i32
    %493 = vector.broadcast %c-2_i32 : i32 to vector<2x256xi32>
    %494 = arith.cmpi sge, %27, %493 : vector<2x256xi32>
    %c14_i32_35 = arith.constant 14 : i32
    %495 = vector.broadcast %c14_i32_35 : i32 to vector<2x256xi32>
    %496 = arith.cmpi slt, %27, %495 : vector<2x256xi32>
    %497 = arith.andi %494, %496 : vector<2x256xi1>
    %cst_36 = arith.constant 0.000000e+00 : f32
    %498 = vector.broadcast %cst_36 : f32 to vector<2x256xf32>
    %499 = arith.select %497, %492, %498 : vector<2x256xi1>, vector<2x256xf32>
    %cst_37 = arith.constant 0.000000e+00 : f32
    %500 = vector.broadcast %cst_37 : f32 to vector<2x256xf32>
    %cst_38 = arith.constant 0.000000e+00 : f32
    %501 = vector.broadcast %cst_38 : f32 to vector<2x256xf32>
    %c6 = arith.constant 6 : index
    %502 = memref.load %arg1[%c6] : memref<98xf32, #tpu.memory_space<smem>>
    %c55 = arith.constant 55 : index
    %503 = memref.load %arg1[%c55] : memref<98xf32, #tpu.memory_space<smem>>
    %504 = vector.broadcast %502 : f32 to vector<2x1xf32>
    %505 = vector.broadcast %503 : f32 to vector<2x1xf32>
    %506 = arith.select %10, %504, %505 : vector<2x1xi1>, vector<2x1xf32>
    %c45_i32 = arith.constant 45 : i32
    %507 = tpu.dynamic_rotate %7 by %c45_i32 dim 1 : vector<2x384xf32>, i32 -> vector<2x384xf32>
    %508 = vector.extract_strided_slice %507 {offsets = [0, 0], sizes = [2, 256], strides = [1, 1]} : vector<2x384xf32> to vector<2x256xf32>
    %509 = vector.broadcast %506 : vector<2x1xf32> to vector<2x256xf32>
    %510 = arith.mulf %509, %508 : vector<2x256xf32>
    %511 = arith.addf %500, %510 : vector<2x256xf32>
    %c13 = arith.constant 13 : index
    %512 = memref.load %arg1[%c13] : memref<98xf32, #tpu.memory_space<smem>>
    %c62 = arith.constant 62 : index
    %513 = memref.load %arg1[%c62] : memref<98xf32, #tpu.memory_space<smem>>
    %514 = vector.broadcast %512 : f32 to vector<2x1xf32>
    %515 = vector.broadcast %513 : f32 to vector<2x1xf32>
    %516 = arith.select %10, %514, %515 : vector<2x1xi1>, vector<2x1xf32>
    %c29_i32 = arith.constant 29 : i32
    %517 = tpu.dynamic_rotate %7 by %c29_i32 dim 1 : vector<2x384xf32>, i32 -> vector<2x384xf32>
    %518 = vector.extract_strided_slice %517 {offsets = [0, 0], sizes = [2, 256], strides = [1, 1]} : vector<2x384xf32> to vector<2x256xf32>
    %519 = vector.broadcast %516 : vector<2x1xf32> to vector<2x256xf32>
    %520 = arith.mulf %519, %518 : vector<2x256xf32>
    %521 = arith.addf %501, %520 : vector<2x256xf32>
    %c20 = arith.constant 20 : index
    %522 = memref.load %arg1[%c20] : memref<98xf32, #tpu.memory_space<smem>>
    %c69 = arith.constant 69 : index
    %523 = memref.load %arg1[%c69] : memref<98xf32, #tpu.memory_space<smem>>
    %524 = vector.broadcast %522 : f32 to vector<2x1xf32>
    %525 = vector.broadcast %523 : f32 to vector<2x1xf32>
    %526 = arith.select %10, %524, %525 : vector<2x1xi1>, vector<2x1xf32>
    %c13_i32 = arith.constant 13 : i32
    %527 = tpu.dynamic_rotate %7 by %c13_i32 dim 1 : vector<2x384xf32>, i32 -> vector<2x384xf32>
    %528 = vector.extract_strided_slice %527 {offsets = [0, 0], sizes = [2, 256], strides = [1, 1]} : vector<2x384xf32> to vector<2x256xf32>
    %529 = vector.broadcast %526 : vector<2x1xf32> to vector<2x256xf32>
    %530 = arith.mulf %529, %528 : vector<2x256xf32>
    %531 = arith.addf %511, %530 : vector<2x256xf32>
    %c27 = arith.constant 27 : index
    %532 = memref.load %arg1[%c27] : memref<98xf32, #tpu.memory_space<smem>>
    %c76 = arith.constant 76 : index
    %533 = memref.load %arg1[%c76] : memref<98xf32, #tpu.memory_space<smem>>
    %534 = vector.broadcast %532 : f32 to vector<2x1xf32>
    %535 = vector.broadcast %533 : f32 to vector<2x1xf32>
    %536 = arith.select %10, %534, %535 : vector<2x1xi1>, vector<2x1xf32>
    %c381_i32 = arith.constant 381 : i32
    %537 = tpu.dynamic_rotate %7 by %c381_i32 dim 1 : vector<2x384xf32>, i32 -> vector<2x384xf32>
    %538 = vector.extract_strided_slice %537 {offsets = [0, 0], sizes = [2, 256], strides = [1, 1]} : vector<2x384xf32> to vector<2x256xf32>
    %539 = vector.broadcast %536 : vector<2x1xf32> to vector<2x256xf32>
    %540 = arith.mulf %539, %538 : vector<2x256xf32>
    %541 = arith.addf %521, %540 : vector<2x256xf32>
    %c34 = arith.constant 34 : index
    %542 = memref.load %arg1[%c34] : memref<98xf32, #tpu.memory_space<smem>>
    %c83 = arith.constant 83 : index
    %543 = memref.load %arg1[%c83] : memref<98xf32, #tpu.memory_space<smem>>
    %544 = vector.broadcast %542 : f32 to vector<2x1xf32>
    %545 = vector.broadcast %543 : f32 to vector<2x1xf32>
    %546 = arith.select %10, %544, %545 : vector<2x1xi1>, vector<2x1xf32>
    %c365_i32 = arith.constant 365 : i32
    %547 = tpu.dynamic_rotate %7 by %c365_i32 dim 1 : vector<2x384xf32>, i32 -> vector<2x384xf32>
    %548 = vector.extract_strided_slice %547 {offsets = [0, 0], sizes = [2, 256], strides = [1, 1]} : vector<2x384xf32> to vector<2x256xf32>
    %549 = vector.broadcast %546 : vector<2x1xf32> to vector<2x256xf32>
    %550 = arith.mulf %549, %548 : vector<2x256xf32>
    %551 = arith.addf %531, %550 : vector<2x256xf32>
    %c41 = arith.constant 41 : index
    %552 = memref.load %arg1[%c41] : memref<98xf32, #tpu.memory_space<smem>>
    %c90 = arith.constant 90 : index
    %553 = memref.load %arg1[%c90] : memref<98xf32, #tpu.memory_space<smem>>
    %554 = vector.broadcast %552 : f32 to vector<2x1xf32>
    %555 = vector.broadcast %553 : f32 to vector<2x1xf32>
    %556 = arith.select %10, %554, %555 : vector<2x1xi1>, vector<2x1xf32>
    %c349_i32 = arith.constant 349 : i32
    %557 = tpu.dynamic_rotate %7 by %c349_i32 dim 1 : vector<2x384xf32>, i32 -> vector<2x384xf32>
    %558 = vector.extract_strided_slice %557 {offsets = [0, 0], sizes = [2, 256], strides = [1, 1]} : vector<2x384xf32> to vector<2x256xf32>
    %559 = vector.broadcast %556 : vector<2x1xf32> to vector<2x256xf32>
    %560 = arith.mulf %559, %558 : vector<2x256xf32>
    %561 = arith.addf %541, %560 : vector<2x256xf32>
    %c48 = arith.constant 48 : index
    %562 = memref.load %arg1[%c48] : memref<98xf32, #tpu.memory_space<smem>>
    %c97 = arith.constant 97 : index
    %563 = memref.load %arg1[%c97] : memref<98xf32, #tpu.memory_space<smem>>
    %564 = vector.broadcast %562 : f32 to vector<2x1xf32>
    %565 = vector.broadcast %563 : f32 to vector<2x1xf32>
    %566 = arith.select %10, %564, %565 : vector<2x1xi1>, vector<2x1xf32>
    %c333_i32 = arith.constant 333 : i32
    %567 = tpu.dynamic_rotate %7 by %c333_i32 dim 1 : vector<2x384xf32>, i32 -> vector<2x384xf32>
    %568 = vector.extract_strided_slice %567 {offsets = [0, 0], sizes = [2, 256], strides = [1, 1]} : vector<2x384xf32> to vector<2x256xf32>
    %569 = vector.broadcast %566 : vector<2x1xf32> to vector<2x256xf32>
    %570 = arith.mulf %569, %568 : vector<2x256xf32>
    %571 = arith.addf %551, %570 : vector<2x256xf32>
    %572 = arith.addf %571, %561 : vector<2x256xf32>
    %c-3_i32 = arith.constant -3 : i32
    %573 = vector.broadcast %c-3_i32 : i32 to vector<2x256xi32>
    %574 = arith.cmpi sge, %27, %573 : vector<2x256xi32>
    %c13_i32_39 = arith.constant 13 : i32
    %575 = vector.broadcast %c13_i32_39 : i32 to vector<2x256xi32>
    %576 = arith.cmpi slt, %27, %575 : vector<2x256xi32>
    %577 = arith.andi %574, %576 : vector<2x256xi1>
    %cst_40 = arith.constant 0.000000e+00 : f32
    %578 = vector.broadcast %cst_40 : f32 to vector<2x256xf32>
    %579 = arith.select %577, %572, %578 : vector<2x256xi1>, vector<2x256xf32>
    %580 = arith.addf %107, %187 : vector<2x256xf32>
    %581 = arith.addf %267, %339 : vector<2x256xf32>
    %582 = arith.addf %419, %499 : vector<2x256xf32>
    %583 = arith.addf %580, %581 : vector<2x256xf32>
    %584 = arith.addf %582, %579 : vector<2x256xf32>
    %585 = arith.addf %583, %584 : vector<2x256xf32>
    %586 = vector.extract_strided_slice %585 {offsets = [0, 0], sizes = [1, 256], strides = [1, 1]} : vector<2x256xf32> to vector<1x256xf32>
    %587 = vector.extract_strided_slice %585 {offsets = [1, 0], sizes = [1, 256], strides = [1, 1]} : vector<2x256xf32> to vector<1x256xf32>
    %588 = arith.addf %586, %587 : vector<1x256xf32>
    %589 = arith.negf %588 : vector<1x256xf32>
    %590 = math.exp %589 : vector<1x256xf32>
    %cst_41 = arith.constant 1.000000e+00 : f32
    %591 = vector.broadcast %cst_41 : f32 to vector<1x256xf32>
    %592 = arith.addf %591, %590 : vector<1x256xf32>
    %593 = arith.divf %591, %592 : vector<1x256xf32>
    %c0_42 = arith.constant 0 : index
    %c0_43 = arith.constant 0 : index
    %c0_44 = arith.constant 0 : index
    %594 = vector.load %arg3[%c0_42, %c0_43, %c0_44] : memref<1x1x256xf32, #tpu.memory_space<vmem>>, vector<1x1x256xf32>
    %595 = vector.shape_cast %594 : vector<1x1x256xf32> to vector<1x256xf32>
    %596 = vector.shape_cast %593 : vector<1x256xf32> to vector<1x1x256xf32>
    tpu.vector_store %arg3[%c0_42, %c0_43, %c0_44], %596 {strides = array<i32>} : memref<1x1x256xf32, #tpu.memory_space<vmem>>, vector<1x1x256xf32>,
    return
  }
  func.func @transform_0(%arg0: i32) -> i32 {
    %c0_i32 = arith.constant 0 : i32
    %c0_i32_0 = arith.constant 0 : i32
    return %c0_i32 : i32
  }
  func.func @transform_1(%arg0: i32) -> (i32, i32, i32) {
    %c0_i32 = arith.constant 0 : i32
    %c0_i32_0 = arith.constant 0 : i32
    %c0_i32_1 = arith.constant 0 : i32
    return %arg0, %c0_i32, %c0_i32_0 : i32, i32, i32
  }
  func.func @transform_2(%arg0: i32) -> (i32, i32, i32) {
    %c0_i32 = arith.constant 0 : i32
    %c0_i32_0 = arith.constant 0 : i32
    %c0_i32_1 = arith.constant 0 : i32
    return %arg0, %c0_i32, %c0_i32_0 : i32, i32, i32
  }
}

</mosaic_0001>

<llo_original>
// kernel: tpu_custom_call.1
$region0: #{tpu_custom_call.1}
  #allocation0 [shape = 'u32[]', space=smem, size = 0x4, offset = 0x4, fixed_abs, tag = 'smem constant byte address 0x4 - core index']
  #allocation1 [shape = 'u32[72,128]{1,0:T(1,128)}', space=vmem, size = 0x9000, scoped, tag = 'internal scratch']
  %s0 = inlined_call_operand.hbm [shape: f32[98], index: 0, kind: input, shape index: {}]
  %s1 = inlined_call_operand.hbm [shape: f32[2,4,256], index: 1, kind: input, shape index: {}]
  %s2 = inlined_call_operand.hbm [shape: f32[2,1,256], index: 2, kind: output, shape index: {}]
  %s3 = sld [smem:[#allocation0]]
  $region49: #{tpu_custom_call.1} parent=0
    _
  %s5 = ssub.s32 1, %s3
  %s6 = scalar_select 0, %s5, %s3
  $region1: #{tpu_custom_call.1} parent=0
    #allocation2 [shape = 'u8[512]{0}', space=smem, size = 0x200, scoped, tag = 'input window, operand 0, single buffered']
    #allocation3 [shape = 's32[2]{0}', space=sflag, size = 0x8, scoped, tag = 'scoped memory for tpu_custom_call.1']
    #allocation4 [shape = 's32[2]{0}', space=sflag, size = 0x8, scoped, tag = 'scoped memory for tpu_custom_call.1']
    #allocation5 [shape = 's32[2]{0}', space=sflag, size = 0x8, scoped, tag = 'scoped memory for tpu_custom_call.1']
    #allocation6 [shape = 'u8[8192]{0}', space=vmem, size = 0x2000, scoped, tag = 'input window, operand 1']
    #allocation7 [shape = 'u8[2048]{0}', space=vmem, size = 0x800, scoped, tag = 'output window, operand 0']
    %7 = vsyncpa [#allocation5], 0
    %8 = vsyncpa [#allocation3], 0
    %s9 = scalar_lea.sflag [#allocation3], 1
    %10 = vsyncpa %s9, 0
    %11 = vsyncpa [#allocation4], 0
    %s12 = scalar_lea.sflag [#allocation4], 1
    %13 = vsyncpa %s12, 0
    loop: start=0, step=1, limit=4
    $region2: #{tpu_custom_call.1} parent=1 // loop_pre_header
      _
    $region3: #{tpu_custom_call.1} parent=1 // loop_header
      %s15 = sphi 0, %s19
      %p16 = scmp.ge.s32.totalorder %s15, 4
      %s23 = sphi 0, %s23
      %s25 = sphi 0, %s23
      %s26 = sphi 0, %s25
      %s40 = sphi 0, %s26
      %s46 = sphi 0, %s48
      %s49 = sphi 0, %s46
      %s50 = sphi 0, %s49
      %s66 = sphi 0, %s50
      %s72 = sphi 0, %s74
      %s75 = sphi 0, %s72
      %s76 = sphi 0, %s75
      %s92 = sphi 0, %s76
    $region4: #{tpu_custom_call.1} parent=1 // loop_header_branch
      %18 = sbr.rel (%p16) target = $region8
    $region5: #{tpu_custom_call.1} parent=1 // loop_body
      %s20 = ssub.s32 %s15, 1
      %s21 = ssub.s32 %s15, 2
      %s22 = sadd.s32 %s15, 1
      %s24 = sadd.s32 %s23, 1
      %p27 = scmp.eq.s32.totalorder %s15, 1
      %p28 = scmp.ne.s32.totalorder %s23, %s25
      %p29 = scmp.eq.s32.totalorder %s15, 0
      %p30 = por %p28, %p29
      %p31 = scmp.ne.s32.totalorder %s23, %s25
      %p32 = scmp.eq.s32.totalorder %s20, 1
      %p33 = por %p31, %p32
      %p34 = scmp.ne.s32.totalorder %s25, %s26
      %p35 = scmp.eq.s32.totalorder %s20, 0
      %p36 = por %p34, %p35
      %p37 = scmp.ne.s32.totalorder %s25, %s26
      %p38 = scmp.eq.s32.totalorder %s21, 1
      %p39 = por %p37, %p38
      %p41 = scmp.ne.s32.totalorder %s26, %s40
      %p42 = scmp.eq.s32.totalorder %s21, 0
      %p43 = por %p41, %p42
      %s44 = ssub.s32 %s15, %s22
      %p45 = scmp.eq.s32.totalorder %s44, 0
      %s47 = sadd.s32 %s46, 1
      %s48 = scalar_select %p45, %s46, %s47
      %p51 = pneg %p45
      %p52 = scmp.eq.s32.totalorder %s15, 1
      %p53 = por %p51, %p52
      %p54 = scmp.ne.s32.totalorder %s46, %s49
      %p55 = scmp.eq.s32.totalorder %s15, 0
      %p56 = por %p54, %p55
      %p57 = scmp.ne.s32.totalorder %s46, %s49
      %p58 = scmp.eq.s32.totalorder %s20, 1
      %p59 = por %p57, %p58
      %p60 = scmp.ne.s32.totalorder %s49, %s50
      %p61 = scmp.eq.s32.totalorder %s20, 0
      %p62 = por %p60, %p61
      %p63 = scmp.ne.s32.totalorder %s49, %s50
      %p64 = scmp.eq.s32.totalorder %s21, 1
      %p65 = por %p63, %p64
      %p67 = scmp.ne.s32.totalorder %s50, %s66
      %p68 = scmp.eq.s32.totalorder %s21, 0
      %p69 = por %p67, %p68
      %s70 = ssub.s32 %s15, %s22
      %p71 = scmp.eq.s32.totalorder %s70, 0
      %s73 = sadd.s32 %s72, 1
      %s74 = scalar_select %p71, %s72, %s73
      %p77 = pneg %p71
      %p78 = scmp.eq.s32.totalorder %s15, 1
      %p79 = por %p77, %p78
      %p80 = scmp.ne.s32.totalorder %s72, %s75
      %p81 = scmp.eq.s32.totalorder %s15, 0
      %p82 = por %p80, %p81
      %p83 = scmp.ne.s32.totalorder %s72, %s75
      %p84 = scmp.eq.s32.totalorder %s20, 1
      %p85 = por %p83, %p84
      %p86 = scmp.ne.s32.totalorder %s75, %s76
      %p87 = scmp.eq.s32.totalorder %s20, 0
      %p88 = por %p86, %p87
      %p89 = scmp.ne.s32.totalorder %s75, %s76
      %p90 = scmp.eq.s32.totalorder %s21, 1
      %p91 = por %p89, %p90
      %p93 = scmp.ne.s32.totalorder %s76, %s92
      %p94 = scmp.eq.s32.totalorder %s21, 0
      %p95 = por %p93, %p94
      %p96 = scmp.le.s32.totalorder 1, %s15
      %p97 = scmp.lt.s32.totalorder %s15, 3
      %p98 = pnand %p96, %p97
      %p99 = pneg %p98
      // Predicated region
      $region9: #{tpu_custom_call.1} parent=5 // pred_check
        _
      $region10: #{tpu_custom_call.1} parent=5 // pred_check_branch
        %101 = sbr.rel (%p98) target = $region12
      $region11: #{tpu_custom_call.1} parent=5 // pred_region
        %s102 = ssub.s32 %s15, 1
        // Predicated region
        $region13: #{tpu_custom_call.1} parent=11 // pred_check
          %p103 = pneg %p36
        $region14: #{tpu_custom_call.1} parent=11 // pred_check_branch
          %105 = sbr.rel (%p103) target = $region16
        $region15: #{tpu_custom_call.1} parent=11 // pred_region
          %107 = vsyncadd [#allocation5], 0
          %s109 = sshll.u32 %s0, 4
          %s110 = int_to_ptr.hbm [resolvable:$true] %s109
          %112 = dma.hbm_to_smem %s110, 16, [#allocation2], [#allocation5]
        $region16: #{tpu_custom_call.1} parent=11 // pred_fallthru
          _
      $region12: #{tpu_custom_call.1} parent=5 // pred_fallthru
        _
      %p113 = scmp.lt.s32.totalorder %s15, 2
      // Predicated region
      $region17: #{tpu_custom_call.1} parent=5 // pred_check
        %p114 = pneg %p113
      $region18: #{tpu_custom_call.1} parent=5 // pred_check_branch
        %116 = sbr.rel (%p114) target = $region20
      $region19: #{tpu_custom_call.1} parent=5 // pred_region
        // Predicated region
        $region21: #{tpu_custom_call.1} parent=19 // pred_check
          %p117 = pneg %p56
        $region22: #{tpu_custom_call.1} parent=19 // pred_check_branch
          %119 = sbr.rel (%p117) target = $region24
        $region23: #{tpu_custom_call.1} parent=19 // pred_region
          %s120 = sand.u32 %s46, 1
          %s121 = scalar_lea.sflag [#allocation3], %s120
          %s122 = sand.u32 %s46, 1
          %s123 = smul.addr %s122, 8
          %s124 = scalar_lea.vmem [#allocation6], %s123
          %126 = vsyncadd %s121, 0
          %s127 = smul.addr %s15, 2
          %s128 = smul.addr %s127, 4
          %s129 = scalar_lea.hbm %s1, %s128
          %s131 = sshll.u32 %s129, 4
          %s132 = int_to_ptr.hbm [resolvable:$true] %s131
          %s133 = sshll.u32 %s124, 4
          %s134 = int_to_ptr.vmem [resolvable:$true] %s133
          %136 = dma.hbm_to_vmem [thread:$0]  %s132, 128, %s134, %s121
        $region24: #{tpu_custom_call.1} parent=19 // pred_fallthru
          _
      $region20: #{tpu_custom_call.1} parent=5 // pred_fallthru
        _
      %p137 = scmp.le.s32.totalorder 1, %s15
      %p138 = scmp.lt.s32.totalorder %s15, 3
      %p139 = pnand %p137, %p138
      %p140 = pneg %p139
      // Predicated region
      $region25: #{tpu_custom_call.1} parent=5 // pred_check
        _
      $region26: #{tpu_custom_call.1} parent=5 // pred_check_branch
        %142 = sbr.rel (%p139) target = $region28
      $region27: #{tpu_custom_call.1} parent=5 // pred_region
        %s143 = ssub.s32 %s15, 1
        // Predicated region
        $region29: #{tpu_custom_call.1} parent=27 // pred_check
          %p144 = pneg %p36
        $region30: #{tpu_custom_call.1} parent=27 // pred_check_branch
          %146 = sbr.rel (%p144) target = $region32
        $region31: #{tpu_custom_call.1} parent=27 // pred_region
          %148 = dma.done [#allocation5], 16
        $region32: #{tpu_custom_call.1} parent=27 // pred_fallthru
          _
        %s149 = sand.u32 %s49, 1
        %s150 = scalar_lea.sflag [#allocation3], %s149
        %s151 = sand.u32 %s49, 1
        %s152 = smul.addr %s151, 8
        %s153 = scalar_lea.vmem [#allocation6], %s152
        // Predicated region
        $region33: #{tpu_custom_call.1} parent=27 // pred_check
          %p154 = pneg %p62
        $region34: #{tpu_custom_call.1} parent=27 // pred_check_branch
          %156 = sbr.rel (%p154) target = $region36
        $region35: #{tpu_custom_call.1} parent=27 // pred_region
          %158 = dma.done %s150, 128
        $region36: #{tpu_custom_call.1} parent=27 // pred_fallthru
          _
        %159 = sfence
        %p160 = pneg %p36
        %p161 = pneg %p33
        %s162 = sand.u32 %s49, 1
        %s163 = scalar_lea.sflag [#allocation3], %s162
        %s164 = sand.u32 %s49, 1
        %s165 = smul.addr %s164, 8
        %s166 = scalar_lea.vmem [#allocation6], %s165
        %p167 = pneg %p62
        %p168 = pneg %p59
        %p169 = pneg %p88
        %p170 = pneg %p85
        %s171 = sand.u32 %s75, 1
        %s172 = scalar_lea.sflag [#allocation4], %s171
        %s173 = sand.u32 %s75, 1
        %s174 = smul.addr %s173, 2
        %s175 = scalar_lea.vmem [#allocation7], %s174
        %v176 = vld [vmem:[%s153] sm:$0xff]
        %178 = vst [vmem:[#allocation1] ss:$2 sm:$0xff] %v176
        %v179 = vld.sshfl [vmem:[#allocation1] sm:$0xff pattern:$0x75316420]
        %v180 = vld.sshfl [vmem:[#allocation1 + $0x8] sm:$0xff pattern:$0x75316420]
        %vm183 = vcmask 1043456
        %v184 = vsel %vm183, %v179, 0.0
        %v185 = vrot.slane %v184, 4
        %v186 = vadd.f32 %v184, %v185
        %v187 = vrot.slane %v186, 2
        %v188 = vadd.f32 %v186, %v187
        %v189 = vrot.slane %v188, 1
        %v190 = vadd.f32 %v188, %v189
        %v191 = vsel %vm183, %v180, 0.0
        %v192 = vrot.slane %v191, 4
        %v193 = vadd.f32 %v191, %v192
        %v194 = vrot.slane %v193, 2
        %v195 = vadd.f32 %v193, %v194
        %v196 = vrot.slane %v195, 1
        %v197 = vadd.f32 %v195, %v196
        %198 = vst [vmem:[#allocation1] ss:$2 sm:$0xff] %v176
        %v199 = vld.sshfl [vmem:[#allocation1] sm:$0xff pattern:$0x75316420]
        %v200 = vld.sshfl [vmem:[#allocation1 + $0x8] sm:$0xff pattern:$0x75316420]
        %v203 = vsel %vm183, %v199, -inf
        %v204 = vrot.slane %v203, 4
        %v205 = vmax.f32 %v203, %v204
        %v206 = vrot.slane %v205, 2
        %v207 = vmax.f32 %v205, %v206
        %v208 = vrot.slane %v207, 1
        %v209 = vmax.f32 %v207, %v208
        %v210 = vsel %vm183, %v200, -inf
        %v211 = vrot.slane %v210, 4
        %v212 = vmax.f32 %v210, %v211
        %v213 = vrot.slane %v212, 2
        %v214 = vmax.f32 %v212, %v213
        %v215 = vrot.slane %v214, 1
        %v216 = vmax.f32 %v214, %v215
        %v217 = vmul.f32 %v190, 0.25
        %v218 = vmul.f32 %v197, 0.25
        %vm219 = vcmask 1040384
        %v220 = vsel %vm219, %v217, %v209
        %v221 = vsel %vm219, %v218, %v216
        %v222 = vlaneseq
        %v223 = vshrl.u32 %v222, 7
        %vm224 = vcmp.lt.s32.totalorder %v223, 1
        %v225 = vlaneseq
        %v226 = vand.u32 %v225, 127
        %v227 = vadd.s32 %v226, 128
        %vm228 = vcmp.lt.s32.totalorder %v226, 0
        %v229 = vsub.s32 0, %v226
        %v230 = vsel %vm228, %v229, %v226
        %v231 = vshrl.u32 %v230, 4
        %v232 = vand.u32 %v230, 15
        %v233 = vsub.s32 0, %v232
        %v234 = vsel %vm228, %v233, %v232
        %vm235 = vcmp.lt.s32.totalorder %v227, 0
        %v236 = vsub.s32 0, %v227
        %v237 = vsel %vm235, %v236, %v227
        %v238 = vshrl.u32 %v237, 4
        %v239 = vand.u32 %v237, 15
        %v240 = vsub.s32 0, %v239
        %v241 = vsel %vm235, %v240, %v239
        %vm242 = vcmp.ne.s32.totalorder %v234, 0
        %vm243 = vcmp.ne.s32.totalorder %v241, 0
        %vm244 = vcmp.lt.s32.totalorder %v234, 0
        %vm245 = vcmp.lt.s32.totalorder %v241, 0
        %vm246 = vmand %vm244, %vm242
        %vm247 = vmand %vm245, %vm243
        %v248 = vadd.s32 %v234, 16
        %v249 = vadd.s32 %v241, 16
        %v250 = vsel %vm246, %v248, %v234
        %v251 = vsel %vm247, %v249, %v241
        %s252 = sld [smem:[#allocation2]]
        %s253 = sld [smem:[#allocation2 + $0x31]]
        %v254 = vstv %s252
        %v255 = vstv %s253
        %v256 = vsel %vm224, %v254, %v255
        %257 = vrot.lane.b32.xlu0 %v220, 51
        %v258 = vpop.permute.xlu0 %257
        %259 = vrot.lane.b32.xlu0 %v221, 51
        %v260 = vpop.permute.xlu0 %259
        %261 = vrot.lane.b32.xlu0 0.0, 51
        %v262 = vpop.permute.xlu0 %261
        %vm263 = vcmp.lt.s32.totalorder %v226, 51
        %v264 = vsel %vm263, %v258, %v260
        %v265 = vsel %vm263, %v262, %v258
        %v266 = vmul.f32 %v256, %v265
        %v267 = vmul.f32 %v256, %v264
        %v268 = vadd.f32 %v266, 0.0
        %v269 = vadd.f32 %v267, 0.0
        %s270 = sld [smem:[#allocation2 + $0x7]]
        %s271 = sld [smem:[#allocation2 + $0x38]]
        %v272 = vstv %s270
        %v273 = vstv %s271
        %v274 = vsel %vm224, %v272, %v273
        %275 = vrot.lane.b32.xlu0 %v220, 35
        %v276 = vpop.permute.xlu0 %275
        %277 = vrot.lane.b32.xlu0 %v221, 35
        %v278 = vpop.permute.xlu0 %277
        %279 = vrot.lane.b32.xlu0 0.0, 35
        %v280 = vpop.permute.xlu0 %279
        %vm281 = vcmp.lt.s32.totalorder %v226, 35
        %v282 = vsel %vm281, %v276, %v278
        %v283 = vsel %vm281, %v280, %v276
        %v284 = vmul.f32 %v274, %v283
        %v285 = vmul.f32 %v274, %v282
        %v286 = vadd.f32 %v284, 0.0
        %v287 = vadd.f32 %v285, 0.0
        %s288 = sld [smem:[#allocation2 + $0xe]]
        %s289 = sld [smem:[#allocation2 + $0x3f]]
        %v290 = vstv %s288
        %v291 = vstv %s289
        %v292 = vsel %vm224, %v290, %v291
        %293 = vrot.lane.b32.xlu0 %v220, 19
        %v294 = vpop.permute.xlu0 %293
        %295 = vrot.lane.b32.xlu0 %v221, 19
        %v296 = vpop.permute.xlu0 %295
        %297 = vrot.lane.b32.xlu0 0.0, 19
        %v298 = vpop.permute.xlu0 %297
        %vm299 = vcmp.lt.s32.totalorder %v226, 19
        %v300 = vsel %vm299, %v294, %v296
        %v301 = vsel %vm299, %v298, %v294
        %v302 = vmul.f32 %v292, %v301
        %v303 = vmul.f32 %v292, %v300
        %v304 = vadd.f32 %v268, %v302
        %v305 = vadd.f32 %v269, %v303
        %s306 = sld [smem:[#allocation2 + $0x15]]
        %s307 = sld [smem:[#allocation2 + $0x46]]
        %v308 = vstv %s306
        %v309 = vstv %s307
        %v310 = vsel %vm224, %v308, %v309
        %311 = vrot.lane.b32.xlu0 %v220, 3
        %v312 = vpop.permute.xlu0 %311
        %313 = vrot.lane.b32.xlu0 %v221, 3
        %v314 = vpop.permute.xlu0 %313
        %315 = vrot.lane.b32.xlu0 0.0, 3
        %v316 = vpop.permute.xlu0 %315
        %vm317 = vcmp.lt.s32.totalorder %v226, 3
        %v318 = vsel %vm317, %v312, %v314
        %v319 = vsel %vm317, %v316, %v312
        %v320 = vmul.f32 %v310, %v319
        %v321 = vmul.f32 %v310, %v318
        %v322 = vadd.f32 %v286, %v320
        %v323 = vadd.f32 %v287, %v321
        %s324 = sld [smem:[#allocation2 + $0x1c]]
        %s325 = sld [smem:[#allocation2 + $0x4d]]
        %v326 = vstv %s324
        %v327 = vstv %s325
        %v328 = vsel %vm224, %v326, %v327
        %329 = vrot.lane.b32.xlu0 %v220, 115
        %v330 = vpop.permute.xlu0 %329
        %331 = vrot.lane.b32.xlu0 %v221, 115
        %v332 = vpop.permute.xlu0 %331
        %333 = vrot.lane.b32.xlu0 0.0, 115
        %v334 = vpop.permute.xlu0 %333
        %vm335 = vcmp.lt.s32.totalorder %v226, 115
        %v336 = vsel %vm335, %v332, %v334
        %v337 = vsel %vm335, %v330, %v332
        %v338 = vmul.f32 %v328, %v337
        %v339 = vmul.f32 %v328, %v336
        %v340 = vadd.f32 %v304, %v338
        %v341 = vadd.f32 %v305, %v339
        %s342 = sld [smem:[#allocation2 + $0x23]]
        %s343 = sld [smem:[#allocation2 + $0x54]]
        %v344 = vstv %s342
        %v345 = vstv %s343
        %v346 = vsel %vm224, %v344, %v345
        %347 = vrot.lane.b32.xlu0 %v220, 99
        %v348 = vpop.permute.xlu0 %347
        %349 = vrot.lane.b32.xlu0 %v221, 99
        %v350 = vpop.permute.xlu0 %349
        %351 = vrot.lane.b32.xlu0 0.0, 99
        %v352 = vpop.permute.xlu0 %351
        %vm353 = vcmp.lt.s32.totalorder %v226, 99
        %v354 = vsel %vm353, %v350, %v352
        %v355 = vsel %vm353, %v348, %v350
        %v356 = vmul.f32 %v346, %v355
        %v357 = vmul.f32 %v346, %v354
        %v358 = vadd.f32 %v322, %v356
        %v359 = vadd.f32 %v323, %v357
        %s360 = sld [smem:[#allocation2 + $0x2a]]
        %s361 = sld [smem:[#allocation2 + $0x5b]]
        %v362 = vstv %s360
        %v363 = vstv %s361
        %v364 = vsel %vm224, %v362, %v363
        %365 = vrot.lane.b32.xlu0 %v220, 83
        %v366 = vpop.permute.xlu0 %365
        %367 = vrot.lane.b32.xlu0 %v221, 83
        %v368 = vpop.permute.xlu0 %367
        %369 = vrot.lane.b32.xlu0 0.0, 83
        %v370 = vpop.permute.xlu0 %369
        %vm371 = vcmp.lt.s32.totalorder %v226, 83
        %v372 = vsel %vm371, %v368, %v370
        %v373 = vsel %vm371, %v366, %v368
        %v374 = vmul.f32 %v364, %v373
        %v375 = vmul.f32 %v364, %v372
        %v376 = vadd.f32 %v340, %v374
        %v377 = vadd.f32 %v341, %v375
        %v378 = vadd.f32 %v376, %v358
        %v379 = vadd.f32 %v377, %v359
        %vm380 = vcmp.ge.s32.totalorder %v250, 3
        %vm381 = vcmp.ge.s32.totalorder %v251, 3
        %vm382 = vcmp.lt.s32.totalorder %v250, 19
        %vm383 = vcmp.lt.s32.totalorder %v251, 19
        %vm384 = vmand %vm380, %vm382
        %vm385 = vmand %vm381, %vm383
        %v386 = vsel %vm384, %v378, 0.0
        %v387 = vsel %vm385, %v379, 0.0
        %s388 = sld [smem:[#allocation2 + $0x1]]
        %s389 = sld [smem:[#allocation2 + $0x32]]
        %v390 = vstv %s388
        %v391 = vstv %s389
        %v392 = vsel %vm224, %v390, %v391
        %393 = vrot.lane.b32.xlu0 %v220, 50
        %v394 = vpop.permute.xlu0 %393
        %395 = vrot.lane.b32.xlu0 %v221, 50
        %v396 = vpop.permute.xlu0 %395
        %397 = vrot.lane.b32.xlu0 0.0, 50
        %v398 = vpop.permute.xlu0 %397
        %vm399 = vcmp.lt.s32.totalorder %v226, 50
        %v400 = vsel %vm399, %v394, %v396
        %v401 = vsel %vm399, %v398, %v394
        %v402 = vmul.f32 %v392, %v401
        %v403 = vmul.f32 %v392, %v400
        %v404 = vadd.f32 %v402, 0.0
        %v405 = vadd.f32 %v403, 0.0
        %s406 = sld [smem:[#allocation2 + $0x8]]
        %s407 = sld [smem:[#allocation2 + $0x39]]
        %v408 = vstv %s406
        %v409 = vstv %s407
        %v410 = vsel %vm224, %v408, %v409
        %411 = vrot.lane.b32.xlu0 %v220, 34
        %v412 = vpop.permute.xlu0 %411
        %413 = vrot.lane.b32.xlu0 %v221, 34
        %v414 = vpop.permute.xlu0 %413
        %415 = vrot.lane.b32.xlu0 0.0, 34
        %v416 = vpop.permute.xlu0 %415
        %vm417 = vcmp.lt.s32.totalorder %v226, 34
        %v418 = vsel %vm417, %v412, %v414
        %v419 = vsel %vm417, %v416, %v412
        %v420 = vmul.f32 %v410, %v419
        %v421 = vmul.f32 %v410, %v418
        %v422 = vadd.f32 %v420, 0.0
        %v423 = vadd.f32 %v421, 0.0
        %s424 = sld [smem:[#allocation2 + $0xf]]
        %s425 = sld [smem:[#allocation2 + $0x40]]
        %v426 = vstv %s424
        %v427 = vstv %s425
        %v428 = vsel %vm224, %v426, %v427
        %429 = vrot.lane.b32.xlu0 %v220, 18
        %v430 = vpop.permute.xlu0 %429
        %431 = vrot.lane.b32.xlu0 %v221, 18
        %v432 = vpop.permute.xlu0 %431
        %433 = vrot.lane.b32.xlu0 0.0, 18
        %v434 = vpop.permute.xlu0 %433
        %vm435 = vcmp.lt.s32.totalorder %v226, 18
        %v436 = vsel %vm435, %v430, %v432
        %v437 = vsel %vm435, %v434, %v430
        %v438 = vmul.f32 %v428, %v437
        %v439 = vmul.f32 %v428, %v436
        %v440 = vadd.f32 %v404, %v438
        %v441 = vadd.f32 %v405, %v439
        %s442 = sld [smem:[#allocation2 + $0x16]]
        %s443 = sld [smem:[#allocation2 + $0x47]]
        %v444 = vstv %s442
        %v445 = vstv %s443
        %v446 = vsel %vm224, %v444, %v445
        %447 = vrot.lane.b32.xlu0 %v220, 2
        %v448 = vpop.permute.xlu0 %447
        %449 = vrot.lane.b32.xlu0 %v221, 2
        %v450 = vpop.permute.xlu0 %449
        %451 = vrot.lane.b32.xlu0 0.0, 2
        %v452 = vpop.permute.xlu0 %451
        %vm453 = vcmp.lt.s32.totalorder %v226, 2
        %v454 = vsel %vm453, %v448, %v450
        %v455 = vsel %vm453, %v452, %v448
        %v456 = vmul.f32 %v446, %v455
        %v457 = vmul.f32 %v446, %v454
        %v458 = vadd.f32 %v422, %v456
        %v459 = vadd.f32 %v423, %v457
        %s460 = sld [smem:[#allocation2 + $0x1d]]
        %s461 = sld [smem:[#allocation2 + $0x4e]]
        %v462 = vstv %s460
        %v463 = vstv %s461
        %v464 = vsel %vm224, %v462, %v463
        %465 = vrot.lane.b32.xlu0 %v220, 114
        %v466 = vpop.permute.xlu0 %465
        %467 = vrot.lane.b32.xlu0 %v221, 114
        %v468 = vpop.permute.xlu0 %467
        %469 = vrot.lane.b32.xlu0 0.0, 114
        %v470 = vpop.permute.xlu0 %469
        %vm471 = vcmp.lt.s32.totalorder %v226, 114
        %v472 = vsel %vm471, %v468, %v470
        %v473 = vsel %vm471, %v466, %v468
        %v474 = vmul.f32 %v464, %v473
        %v475 = vmul.f32 %v464, %v472
        %v476 = vadd.f32 %v440, %v474
        %v477 = vadd.f32 %v441, %v475
        %s478 = sld [smem:[#allocation2 + $0x24]]
        %s479 = sld [smem:[#allocation2 + $0x55]]
        %v480 = vstv %s478
        %v481 = vstv %s479
        %v482 = vsel %vm224, %v480, %v481
        %483 = vrot.lane.b32.xlu0 %v220, 98
        %v484 = vpop.permute.xlu0 %483
        %485 = vrot.lane.b32.xlu0 %v221, 98
        %v486 = vpop.permute.xlu0 %485
        %487 = vrot.lane.b32.xlu0 0.0, 98
        %v488 = vpop.permute.xlu0 %487
        %vm489 = vcmp.lt.s32.totalorder %v226, 98
        %v490 = vsel %vm489, %v486, %v488
        %v491 = vsel %vm489, %v484, %v486
        %v492 = vmul.f32 %v482, %v491
        %v493 = vmul.f32 %v482, %v490
        %v494 = vadd.f32 %v458, %v492
        %v495 = vadd.f32 %v459, %v493
        %s496 = sld [smem:[#allocation2 + $0x2b]]
        %s497 = sld [smem:[#allocation2 + $0x5c]]
        %v498 = vstv %s496
        %v499 = vstv %s497
        %v500 = vsel %vm224, %v498, %v499
        %501 = vrot.lane.b32.xlu0 %v220, 82
        %v502 = vpop.permute.xlu0 %501
        %503 = vrot.lane.b32.xlu0 %v221, 82
        %v504 = vpop.permute.xlu0 %503
        %505 = vrot.lane.b32.xlu0 0.0, 82
        %v506 = vpop.permute.xlu0 %505
        %vm507 = vcmp.lt.s32.totalorder %v226, 82
        %v508 = vsel %vm507, %v504, %v506
        %v509 = vsel %vm507, %v502, %v504
        %v510 = vmul.f32 %v500, %v509
        %v511 = vmul.f32 %v500, %v508
        %v512 = vadd.f32 %v476, %v510
        %v513 = vadd.f32 %v477, %v511
        %v514 = vadd.f32 %v512, %v494
        %v515 = vadd.f32 %v513, %v495
        %vm516 = vcmp.ge.s32.totalorder %v250, 2
        %vm517 = vcmp.ge.s32.totalorder %v251, 2
        %vm518 = vcmp.lt.s32.totalorder %v250, 18
        %vm519 = vcmp.lt.s32.totalorder %v251, 18
        %vm520 = vmand %vm516, %vm518
        %vm521 = vmand %vm517, %vm519
        %v522 = vsel %vm520, %v514, 0.0
        %v523 = vsel %vm521, %v515, 0.0
        %s524 = sld [smem:[#allocation2 + $0x2]]
        %s525 = sld [smem:[#allocation2 + $0x33]]
        %v526 = vstv %s524
        %v527 = vstv %s525
        %v528 = vsel %vm224, %v526, %v527
        %529 = vrot.lane.b32.xlu0 %v220, 49
        %v530 = vpop.permute.xlu0 %529
        %531 = vrot.lane.b32.xlu0 %v221, 49
        %v532 = vpop.permute.xlu0 %531
        %533 = vrot.lane.b32.xlu0 0.0, 49
        %v534 = vpop.permute.xlu0 %533
        %vm535 = vcmp.lt.s32.totalorder %v226, 49
        %v536 = vsel %vm535, %v530, %v532
        %v537 = vsel %vm535, %v534, %v530
        %v538 = vmul.f32 %v528, %v537
        %v539 = vmul.f32 %v528, %v536
        %v540 = vadd.f32 %v538, 0.0
        %v541 = vadd.f32 %v539, 0.0
        %s542 = sld [smem:[#allocation2 + $0x9]]
        %s543 = sld [smem:[#allocation2 + $0x3a]]
        %v544 = vstv %s542
        %v545 = vstv %s543
        %v546 = vsel %vm224, %v544, %v545
        %547 = vrot.lane.b32.xlu0 %v220, 33
        %v548 = vpop.permute.xlu0 %547
        %549 = vrot.lane.b32.xlu0 %v221, 33
        %v550 = vpop.permute.xlu0 %549
        %551 = vrot.lane.b32.xlu0 0.0, 33
        %v552 = vpop.permute.xlu0 %551
        %vm553 = vcmp.lt.s32.totalorder %v226, 33
        %v554 = vsel %vm553, %v548, %v550
        %v555 = vsel %vm553, %v552, %v548
        %v556 = vmul.f32 %v546, %v555
        %v557 = vmul.f32 %v546, %v554
        %v558 = vadd.f32 %v556, 0.0
        %v559 = vadd.f32 %v557, 0.0
        %s560 = sld [smem:[#allocation2 + $0x10]]
        %s561 = sld [smem:[#allocation2 + $0x41]]
        %v562 = vstv %s560
        %v563 = vstv %s561
        %v564 = vsel %vm224, %v562, %v563
        %565 = vrot.lane.b32.xlu0 %v220, 17
        %v566 = vpop.permute.xlu0 %565
        %567 = vrot.lane.b32.xlu0 %v221, 17
        %v568 = vpop.permute.xlu0 %567
        %569 = vrot.lane.b32.xlu0 0.0, 17
        %v570 = vpop.permute.xlu0 %569
        %vm571 = vcmp.lt.s32.totalorder %v226, 17
        %v572 = vsel %vm571, %v566, %v568
        %v573 = vsel %vm571, %v570, %v566
        %v574 = vmul.f32 %v564, %v573
        %v575 = vmul.f32 %v564, %v572
        %v576 = vadd.f32 %v540, %v574
        %v577 = vadd.f32 %v541, %v575
        %s578 = sld [smem:[#allocation2 + $0x17]]
        %s579 = sld [smem:[#allocation2 + $0x48]]
        %v580 = vstv %s578
        %v581 = vstv %s579
        %v582 = vsel %vm224, %v580, %v581
        %583 = vrot.lane.b32.xlu0 %v220, 1
        %v584 = vpop.permute.xlu0 %583
        %585 = vrot.lane.b32.xlu0 %v221, 1
        %v586 = vpop.permute.xlu0 %585
        %587 = vrot.lane.b32.xlu0 0.0, 1
        %v588 = vpop.permute.xlu0 %587
        %vm589 = vcmp.lt.s32.totalorder %v226, 1
        %v590 = vsel %vm589, %v584, %v586
        %v591 = vsel %vm589, %v588, %v584
        %v592 = vmul.f32 %v582, %v591
        %v593 = vmul.f32 %v582, %v590
        %v594 = vadd.f32 %v558, %v592
        %v595 = vadd.f32 %v559, %v593
        %s596 = sld [smem:[#allocation2 + $0x1e]]
        %s597 = sld [smem:[#allocation2 + $0x4f]]
        %v598 = vstv %s596
        %v599 = vstv %s597
        %v600 = vsel %vm224, %v598, %v599
        %601 = vrot.lane.b32.xlu0 %v220, 113
        %v602 = vpop.permute.xlu0 %601
        %603 = vrot.lane.b32.xlu0 %v221, 113
        %v604 = vpop.permute.xlu0 %603
        %605 = vrot.lane.b32.xlu0 0.0, 113
        %v606 = vpop.permute.xlu0 %605
        %vm607 = vcmp.lt.s32.totalorder %v226, 113
        %v608 = vsel %vm607, %v604, %v606
        %v609 = vsel %vm607, %v602, %v604
        %v610 = vmul.f32 %v600, %v609
        %v611 = vmul.f32 %v600, %v608
        %v612 = vadd.f32 %v576, %v610
        %v613 = vadd.f32 %v577, %v611
        %s614 = sld [smem:[#allocation2 + $0x25]]
        %s615 = sld [smem:[#allocation2 + $0x56]]
        %v616 = vstv %s614
        %v617 = vstv %s615
        %v618 = vsel %vm224, %v616, %v617
        %619 = vrot.lane.b32.xlu0 %v220, 97
        %v620 = vpop.permute.xlu0 %619
        %621 = vrot.lane.b32.xlu0 %v221, 97
        %v622 = vpop.permute.xlu0 %621
        %623 = vrot.lane.b32.xlu0 0.0, 97
        %v624 = vpop.permute.xlu0 %623
        %vm625 = vcmp.lt.s32.totalorder %v226, 97
        %v626 = vsel %vm625, %v622, %v624
        %v627 = vsel %vm625, %v620, %v622
        %v628 = vmul.f32 %v618, %v627
        %v629 = vmul.f32 %v618, %v626
        %v630 = vadd.f32 %v594, %v628
        %v631 = vadd.f32 %v595, %v629
        %s632 = sld [smem:[#allocation2 + $0x2c]]
        %s633 = sld [smem:[#allocation2 + $0x5d]]
        %v634 = vstv %s632
        %v635 = vstv %s633
        %v636 = vsel %vm224, %v634, %v635
        %637 = vrot.lane.b32.xlu0 %v220, 81
        %v638 = vpop.permute.xlu0 %637
        %639 = vrot.lane.b32.xlu0 %v221, 81
        %v640 = vpop.permute.xlu0 %639
        %641 = vrot.lane.b32.xlu0 0.0, 81
        %v642 = vpop.permute.xlu0 %641
        %vm643 = vcmp.lt.s32.totalorder %v226, 81
        %v644 = vsel %vm643, %v640, %v642
        %v645 = vsel %vm643, %v638, %v640
        %v646 = vmul.f32 %v636, %v645
        %v647 = vmul.f32 %v636, %v644
        %v648 = vadd.f32 %v612, %v646
        %v649 = vadd.f32 %v613, %v647
        %v650 = vadd.f32 %v648, %v630
        %v651 = vadd.f32 %v649, %v631
        %vm652 = vcmp.ge.s32.totalorder %v250, 1
        %vm653 = vcmp.ge.s32.totalorder %v251, 1
        %vm654 = vcmp.lt.s32.totalorder %v250, 17
        %vm655 = vcmp.lt.s32.totalorder %v251, 17
        %vm656 = vmand %vm652, %vm654
        %vm657 = vmand %vm653, %vm655
        %v658 = vsel %vm656, %v650, 0.0
        %v659 = vsel %vm657, %v651, 0.0
        %s660 = sld [smem:[#allocation2 + $0x3]]
        %s661 = sld [smem:[#allocation2 + $0x34]]
        %v662 = vstv %s660
        %v663 = vstv %s661
        %v664 = vsel %vm224, %v662, %v663
        %665 = vrot.lane.b32.xlu0 %v220, 48
        %v666 = vpop.permute.xlu0 %665
        %667 = vrot.lane.b32.xlu0 %v221, 48
        %v668 = vpop.permute.xlu0 %667
        %669 = vrot.lane.b32.xlu0 0.0, 48
        %v670 = vpop.permute.xlu0 %669
        %vm671 = vcmp.lt.s32.totalorder %v226, 48
        %v672 = vsel %vm671, %v666, %v668
        %v673 = vsel %vm671, %v670, %v666
        %v674 = vmul.f32 %v664, %v673
        %v675 = vmul.f32 %v664, %v672
        %v676 = vadd.f32 %v674, 0.0
        %v677 = vadd.f32 %v675, 0.0
        %s678 = sld [smem:[#allocation2 + $0xa]]
        %s679 = sld [smem:[#allocation2 + $0x3b]]
        %v680 = vstv %s678
        %v681 = vstv %s679
        %v682 = vsel %vm224, %v680, %v681
        %683 = vrot.lane.b32.xlu0 %v220, 32
        %v684 = vpop.permute.xlu0 %683
        %685 = vrot.lane.b32.xlu0 %v221, 32
        %v686 = vpop.permute.xlu0 %685
        %687 = vrot.lane.b32.xlu0 0.0, 32
        %v688 = vpop.permute.xlu0 %687
        %vm689 = vcmp.lt.s32.totalorder %v226, 32
        %v690 = vsel %vm689, %v684, %v686
        %v691 = vsel %vm689, %v688, %v684
        %v692 = vmul.f32 %v682, %v691
        %v693 = vmul.f32 %v682, %v690
        %v694 = vadd.f32 %v692, 0.0
        %v695 = vadd.f32 %v693, 0.0
        %s696 = sld [smem:[#allocation2 + $0x11]]
        %s697 = sld [smem:[#allocation2 + $0x42]]
        %v698 = vstv %s696
        %v699 = vstv %s697
        %v700 = vsel %vm224, %v698, %v699
        %701 = vrot.lane.b32.xlu0 %v220, 16
        %v702 = vpop.permute.xlu0 %701
        %703 = vrot.lane.b32.xlu0 %v221, 16
        %v704 = vpop.permute.xlu0 %703
        %705 = vrot.lane.b32.xlu0 0.0, 16
        %v706 = vpop.permute.xlu0 %705
        %vm707 = vcmp.lt.s32.totalorder %v226, 16
        %v708 = vsel %vm707, %v702, %v704
        %v709 = vsel %vm707, %v706, %v702
        %v710 = vmul.f32 %v700, %v709
        %v711 = vmul.f32 %v700, %v708
        %v712 = vadd.f32 %v676, %v710
        %v713 = vadd.f32 %v677, %v711
        %s714 = sld [smem:[#allocation2 + $0x18]]
        %s715 = sld [smem:[#allocation2 + $0x49]]
        %v716 = vstv %s714
        %v717 = vstv %s715
        %v718 = vsel %vm224, %v716, %v717
        %v719 = vmul.f32 %v718, %v220
        %v720 = vmul.f32 %v718, %v221
        %v721 = vadd.f32 %v694, %v719
        %v722 = vadd.f32 %v695, %v720
        %s723 = sld [smem:[#allocation2 + $0x1f]]
        %s724 = sld [smem:[#allocation2 + $0x50]]
        %v725 = vstv %s723
        %v726 = vstv %s724
        %v727 = vsel %vm224, %v725, %v726
        %728 = vrot.lane.b32.xlu0 %v220, 112
        %v729 = vpop.permute.xlu0 %728
        %730 = vrot.lane.b32.xlu0 %v221, 112
        %v731 = vpop.permute.xlu0 %730
        %732 = vrot.lane.b32.xlu0 0.0, 112
        %v733 = vpop.permute.xlu0 %732
        %vm734 = vcmp.lt.s32.totalorder %v226, 112
        %v735 = vsel %vm734, %v731, %v733
        %v736 = vsel %vm734, %v729, %v731
        %v737 = vmul.f32 %v727, %v736
        %v738 = vmul.f32 %v727, %v735
        %v739 = vadd.f32 %v712, %v737
        %v740 = vadd.f32 %v713, %v738
        %s741 = sld [smem:[#allocation2 + $0x26]]
        %s742 = sld [smem:[#allocation2 + $0x57]]
        %v743 = vstv %s741
        %v744 = vstv %s742
        %v745 = vsel %vm224, %v743, %v744
        %746 = vrot.lane.b32.xlu0 %v220, 96
        %v747 = vpop.permute.xlu0 %746
        %748 = vrot.lane.b32.xlu0 %v221, 96
        %v749 = vpop.permute.xlu0 %748
        %750 = vrot.lane.b32.xlu0 0.0, 96
        %v751 = vpop.permute.xlu0 %750
        %vm752 = vcmp.lt.s32.totalorder %v226, 96
        %v753 = vsel %vm752, %v749, %v751
        %v754 = vsel %vm752, %v747, %v749
        %v755 = vmul.f32 %v745, %v754
        %v756 = vmul.f32 %v745, %v753
        %v757 = vadd.f32 %v721, %v755
        %v758 = vadd.f32 %v722, %v756
        %s759 = sld [smem:[#allocation2 + $0x2d]]
        %s760 = sld [smem:[#allocation2 + $0x5e]]
        %v761 = vstv %s759
        %v762 = vstv %s760
        %v763 = vsel %vm224, %v761, %v762
        %764 = vrot.lane.b32.xlu0 %v220, 80
        %v765 = vpop.permute.xlu0 %764
        %766 = vrot.lane.b32.xlu0 %v221, 80
        %v767 = vpop.permute.xlu0 %766
        %768 = vrot.lane.b32.xlu0 0.0, 80
        %v769 = vpop.permute.xlu0 %768
        %vm770 = vcmp.lt.s32.totalorder %v226, 80
        %v771 = vsel %vm770, %v767, %v769
        %v772 = vsel %vm770, %v765, %v767
        %v773 = vmul.f32 %v763, %v772
        %v774 = vmul.f32 %v763, %v771
        %v775 = vadd.f32 %v739, %v773
        %v776 = vadd.f32 %v740, %v774
        %v777 = vadd.f32 %v775, %v757
        %v778 = vadd.f32 %v776, %v758
        %s779 = sld [smem:[#allocation2 + $0x4]]
        %s780 = sld [smem:[#allocation2 + $0x35]]
        %v781 = vstv %s779
        %v782 = vstv %s780
        %v783 = vsel %vm224, %v781, %v782
        %784 = vrot.lane.b32.xlu0 %v220, 47
        %v785 = vpop.permute.xlu0 %784
        %786 = vrot.lane.b32.xlu0 %v221, 47
        %v787 = vpop.permute.xlu0 %786
        %788 = vrot.lane.b32.xlu0 0.0, 47
        %v789 = vpop.permute.xlu0 %788
        %vm790 = vcmp.lt.s32.totalorder %v226, 47
        %v791 = vsel %vm790, %v785, %v787
        %v792 = vsel %vm790, %v789, %v785
        %v793 = vmul.f32 %v783, %v792
        %v794 = vmul.f32 %v783, %v791
        %v795 = vadd.f32 %v793, 0.0
        %v796 = vadd.f32 %v794, 0.0
        %s797 = sld [smem:[#allocation2 + $0xb]]
        %s798 = sld [smem:[#allocation2 + $0x3c]]
        %v799 = vstv %s797
        %v800 = vstv %s798
        %v801 = vsel %vm224, %v799, %v800
        %802 = vrot.lane.b32.xlu0 %v220, 31
        %v803 = vpop.permute.xlu0 %802
        %804 = vrot.lane.b32.xlu0 %v221, 31
        %v805 = vpop.permute.xlu0 %804
        %806 = vrot.lane.b32.xlu0 0.0, 31
        %v807 = vpop.permute.xlu0 %806
        %vm808 = vcmp.lt.s32.totalorder %v226, 31
        %v809 = vsel %vm808, %v803, %v805
        %v810 = vsel %vm808, %v807, %v803
        %v811 = vmul.f32 %v801, %v810
        %v812 = vmul.f32 %v801, %v809
        %v813 = vadd.f32 %v811, 0.0
        %v814 = vadd.f32 %v812, 0.0
        %s815 = sld [smem:[#allocation2 + $0x12]]
        %s816 = sld [smem:[#allocation2 + $0x43]]
        %v817 = vstv %s815
        %v818 = vstv %s816
        %v819 = vsel %vm224, %v817, %v818
        %820 = vrot.lane.b32.xlu0 %v220, 15
        %v821 = vpop.permute.xlu0 %820
        %822 = vrot.lane.b32.xlu0 %v221, 15
        %v823 = vpop.permute.xlu0 %822
        %824 = vrot.lane.b32.xlu0 0.0, 15
        %v825 = vpop.permute.xlu0 %824
        %vm826 = vcmp.lt.s32.totalorder %v226, 15
        %v827 = vsel %vm826, %v821, %v823
        %v828 = vsel %vm826, %v825, %v821
        %v829 = vmul.f32 %v819, %v828
        %v830 = vmul.f32 %v819, %v827
        %v831 = vadd.f32 %v795, %v829
        %v832 = vadd.f32 %v796, %v830
        %s833 = sld [smem:[#allocation2 + $0x19]]
        %s834 = sld [smem:[#allocation2 + $0x4a]]
        %v835 = vstv %s833
        %v836 = vstv %s834
        %v837 = vsel %vm224, %v835, %v836
        %838 = vrot.lane.b32.xlu0 %v220, 127
        %v839 = vpop.permute.xlu0 %838
        %840 = vrot.lane.b32.xlu0 %v221, 127
        %v841 = vpop.permute.xlu0 %840
        %842 = vrot.lane.b32.xlu0 0.0, 127
        %v843 = vpop.permute.xlu0 %842
        %vm844 = vcmp.lt.s32.totalorder %v226, 127
        %v845 = vsel %vm844, %v841, %v843
        %v846 = vsel %vm844, %v839, %v841
        %v847 = vmul.f32 %v837, %v846
        %v848 = vmul.f32 %v837, %v845
        %v849 = vadd.f32 %v813, %v847
        %v850 = vadd.f32 %v814, %v848
        %s851 = sld [smem:[#allocation2 + $0x20]]
        %s852 = sld [smem:[#allocation2 + $0x51]]
        %v853 = vstv %s851
        %v854 = vstv %s852
        %v855 = vsel %vm224, %v853, %v854
        %856 = vrot.lane.b32.xlu0 %v220, 111
        %v857 = vpop.permute.xlu0 %856
        %858 = vrot.lane.b32.xlu0 %v221, 111
        %v859 = vpop.permute.xlu0 %858
        %860 = vrot.lane.b32.xlu0 0.0, 111
        %v861 = vpop.permute.xlu0 %860
        %vm862 = vcmp.lt.s32.totalorder %v226, 111
        %v863 = vsel %vm862, %v859, %v861
        %v864 = vsel %vm862, %v857, %v859
        %v865 = vmul.f32 %v855, %v864
        %v866 = vmul.f32 %v855, %v863
        %v867 = vadd.f32 %v831, %v865
        %v868 = vadd.f32 %v832, %v866
        %s869 = sld [smem:[#allocation2 + $0x27]]
        %s870 = sld [smem:[#allocation2 + $0x58]]
        %v871 = vstv %s869
        %v872 = vstv %s870
        %v873 = vsel %vm224, %v871, %v872
        %874 = vrot.lane.b32.xlu0 %v220, 95
        %v875 = vpop.permute.xlu0 %874
        %876 = vrot.lane.b32.xlu0 %v221, 95
        %v877 = vpop.permute.xlu0 %876
        %878 = vrot.lane.b32.xlu0 0.0, 95
        %v879 = vpop.permute.xlu0 %878
        %vm880 = vcmp.lt.s32.totalorder %v226, 95
        %v881 = vsel %vm880, %v877, %v879
        %v882 = vsel %vm880, %v875, %v877
        %v883 = vmul.f32 %v873, %v882
        %v884 = vmul.f32 %v873, %v881
        %v885 = vadd.f32 %v849, %v883
        %v886 = vadd.f32 %v850, %v884
        %s887 = sld [smem:[#allocation2 + $0x2e]]
        %s888 = sld [smem:[#allocation2 + $0x5f]]
        %v889 = vstv %s887
        %v890 = vstv %s888
        %v891 = vsel %vm224, %v889, %v890
        %892 = vrot.lane.b32.xlu0 %v220, 79
        %v893 = vpop.permute.xlu0 %892
        %894 = vrot.lane.b32.xlu0 %v221, 79
        %v895 = vpop.permute.xlu0 %894
        %896 = vrot.lane.b32.xlu0 0.0, 79
        %v897 = vpop.permute.xlu0 %896
        %vm898 = vcmp.lt.s32.totalorder %v226, 79
        %v899 = vsel %vm898, %v895, %v897
        %v900 = vsel %vm898, %v893, %v895
        %v901 = vmul.f32 %v891, %v900
        %v902 = vmul.f32 %v891, %v899
        %v903 = vadd.f32 %v867, %v901
        %v904 = vadd.f32 %v868, %v902
        %v905 = vadd.f32 %v903, %v885
        %v906 = vadd.f32 %v904, %v886
        %vm907 = vcmp.ge.s32.totalorder %v250, 4294967295
        %vm908 = vcmp.ge.s32.totalorder %v251, 4294967295
        %vm909 = vcmp.lt.s32.totalorder %v250, 15
        %vm910 = vcmp.lt.s32.totalorder %v251, 15
        %vm911 = vmand %vm907, %vm909
        %vm912 = vmand %vm908, %vm910
        %v913 = vsel %vm911, %v905, 0.0
        %v914 = vsel %vm912, %v906, 0.0
        %s915 = sld [smem:[#allocation2 + $0x5]]
        %s916 = sld [smem:[#allocation2 + $0x36]]
        %v917 = vstv %s915
        %v918 = vstv %s916
        %v919 = vsel %vm224, %v917, %v918
        %920 = vrot.lane.b32.xlu0 %v220, 46
        %v921 = vpop.permute.xlu0 %920
        %922 = vrot.lane.b32.xlu0 %v221, 46
        %v923 = vpop.permute.xlu0 %922
        %924 = vrot.lane.b32.xlu0 0.0, 46
        %v925 = vpop.permute.xlu0 %924
        %vm926 = vcmp.lt.s32.totalorder %v226, 46
        %v927 = vsel %vm926, %v921, %v923
        %v928 = vsel %vm926, %v925, %v921
        %v929 = vmul.f32 %v919, %v928
        %v930 = vmul.f32 %v919, %v927
        %v931 = vadd.f32 %v929, 0.0
        %v932 = vadd.f32 %v930, 0.0
        %s933 = sld [smem:[#allocation2 + $0xc]]
        %s934 = sld [smem:[#allocation2 + $0x3d]]
        %v935 = vstv %s933
        %v936 = vstv %s934
        %v937 = vsel %vm224, %v935, %v936
        %938 = vrot.lane.b32.xlu0 %v220, 30
        %v939 = vpop.permute.xlu0 %938
        %940 = vrot.lane.b32.xlu0 %v221, 30
        %v941 = vpop.permute.xlu0 %940
        %942 = vrot.lane.b32.xlu0 0.0, 30
        %v943 = vpop.permute.xlu0 %942
        %vm944 = vcmp.lt.s32.totalorder %v226, 30
        %v945 = vsel %vm944, %v939, %v941
        %v946 = vsel %vm944, %v943, %v939
        %v947 = vmul.f32 %v937, %v946
        %v948 = vmul.f32 %v937, %v945
        %v949 = vadd.f32 %v947, 0.0
        %v950 = vadd.f32 %v948, 0.0
        %s951 = sld [smem:[#allocation2 + $0x13]]
        %s952 = sld [smem:[#allocation2 + $0x44]]
        %v953 = vstv %s951
        %v954 = vstv %s952
        %v955 = vsel %vm224, %v953, %v954
        %956 = vrot.lane.b32.xlu0 %v220, 14
        %v957 = vpop.permute.xlu0 %956
        %958 = vrot.lane.b32.xlu0 %v221, 14
        %v959 = vpop.permute.xlu0 %958
        %960 = vrot.lane.b32.xlu0 0.0, 14
        %v961 = vpop.permute.xlu0 %960
        %vm962 = vcmp.lt.s32.totalorder %v226, 14
        %v963 = vsel %vm962, %v957, %v959
        %v964 = vsel %vm962, %v961, %v957
        %v965 = vmul.f32 %v955, %v964
        %v966 = vmul.f32 %v955, %v963
        %v967 = vadd.f32 %v931, %v965
        %v968 = vadd.f32 %v932, %v966
        %s969 = sld [smem:[#allocation2 + $0x1a]]
        %s970 = sld [smem:[#allocation2 + $0x4b]]
        %v971 = vstv %s969
        %v972 = vstv %s970
        %v973 = vsel %vm224, %v971, %v972
        %974 = vrot.lane.b32.xlu0 %v220, 126
        %v975 = vpop.permute.xlu0 %974
        %976 = vrot.lane.b32.xlu0 %v221, 126
        %v977 = vpop.permute.xlu0 %976
        %978 = vrot.lane.b32.xlu0 0.0, 126
        %v979 = vpop.permute.xlu0 %978
        %vm980 = vcmp.lt.s32.totalorder %v226, 126
        %v981 = vsel %vm980, %v977, %v979
        %v982 = vsel %vm980, %v975, %v977
        %v983 = vmul.f32 %v973, %v982
        %v984 = vmul.f32 %v973, %v981
        %v985 = vadd.f32 %v949, %v983
        %v986 = vadd.f32 %v950, %v984
        %s987 = sld [smem:[#allocation2 + $0x21]]
        %s988 = sld [smem:[#allocation2 + $0x52]]
        %v989 = vstv %s987
        %v990 = vstv %s988
        %v991 = vsel %vm224, %v989, %v990
        %992 = vrot.lane.b32.xlu0 %v220, 110
        %v993 = vpop.permute.xlu0 %992
        %994 = vrot.lane.b32.xlu0 %v221, 110
        %v995 = vpop.permute.xlu0 %994
        %996 = vrot.lane.b32.xlu0 0.0, 110
        %v997 = vpop.permute.xlu0 %996
        %vm998 = vcmp.lt.s32.totalorder %v226, 110
        %v999 = vsel %vm998, %v995, %v997
        %v1000 = vsel %vm998, %v993, %v995
        %v1001 = vmul.f32 %v991, %v1000
        %v1002 = vmul.f32 %v991, %v999
        %v1003 = vadd.f32 %v967, %v1001
        %v1004 = vadd.f32 %v968, %v1002
        %s1005 = sld [smem:[#allocation2 + $0x28]]
        %s1006 = sld [smem:[#allocation2 + $0x59]]
        %v1007 = vstv %s1005
        %v1008 = vstv %s1006
        %v1009 = vsel %vm224, %v1007, %v1008
        %1010 = vrot.lane.b32.xlu0 %v220, 94
        %v1011 = vpop.permute.xlu0 %1010
        %1012 = vrot.lane.b32.xlu0 %v221, 94
        %v1013 = vpop.permute.xlu0 %1012
        %1014 = vrot.lane.b32.xlu0 0.0, 94
        %v1015 = vpop.permute.xlu0 %1014
        %vm1016 = vcmp.lt.s32.totalorder %v226, 94
        %v1017 = vsel %vm1016, %v1013, %v1015
        %v1018 = vsel %vm1016, %v1011, %v1013
        %v1019 = vmul.f32 %v1009, %v1018
        %v1020 = vmul.f32 %v1009, %v1017
        %v1021 = vadd.f32 %v985, %v1019
        %v1022 = vadd.f32 %v986, %v1020
        %s1023 = sld [smem:[#allocation2 + $0x2f]]
        %s1024 = sld [smem:[#allocation2 + $0x60]]
        %v1025 = vstv %s1023
        %v1026 = vstv %s1024
        %v1027 = vsel %vm224, %v1025, %v1026
        %1028 = vrot.lane.b32.xlu0 %v220, 78
        %v1029 = vpop.permute.xlu0 %1028
        %1030 = vrot.lane.b32.xlu0 %v221, 78
        %v1031 = vpop.permute.xlu0 %1030
        %1032 = vrot.lane.b32.xlu0 0.0, 78
        %v1033 = vpop.permute.xlu0 %1032
        %vm1034 = vcmp.lt.s32.totalorder %v226, 78
        %v1035 = vsel %vm1034, %v1031, %v1033
        %v1036 = vsel %vm1034, %v1029, %v1031
        %v1037 = vmul.f32 %v1027, %v1036
        %v1038 = vmul.f32 %v1027, %v1035
        %v1039 = vadd.f32 %v1003, %v1037
        %v1040 = vadd.f32 %v1004, %v1038
        %v1041 = vadd.f32 %v1039, %v1021
        %v1042 = vadd.f32 %v1040, %v1022
        %vm1043 = vcmp.ge.s32.totalorder %v250, 4294967294
        %vm1044 = vcmp.ge.s32.totalorder %v251, 4294967294
        %vm1045 = vcmp.lt.s32.totalorder %v250, 14
        %vm1046 = vcmp.lt.s32.totalorder %v251, 14
        %vm1047 = vmand %vm1043, %vm1045
        %vm1048 = vmand %vm1044, %vm1046
        %v1049 = vsel %vm1047, %v1041, 0.0
        %v1050 = vsel %vm1048, %v1042, 0.0
        %s1051 = sld [smem:[#allocation2 + $0x6]]
        %s1052 = sld [smem:[#allocation2 + $0x37]]
        %v1053 = vstv %s1051
        %v1054 = vstv %s1052
        %v1055 = vsel %vm224, %v1053, %v1054
        %1056 = vrot.lane.b32.xlu0 %v220, 45
        %v1057 = vpop.permute.xlu0 %1056
        %1058 = vrot.lane.b32.xlu0 %v221, 45
        %v1059 = vpop.permute.xlu0 %1058
        %1060 = vrot.lane.b32.xlu0 0.0, 45
        %v1061 = vpop.permute.xlu0 %1060
        %vm1062 = vcmp.lt.s32.totalorder %v226, 45
        %v1063 = vsel %vm1062, %v1057, %v1059
        %v1064 = vsel %vm1062, %v1061, %v1057
        %v1065 = vmul.f32 %v1055, %v1064
        %v1066 = vmul.f32 %v1055, %v1063
        %v1067 = vadd.f32 %v1065, 0.0
        %v1068 = vadd.f32 %v1066, 0.0
        %s1069 = sld [smem:[#allocation2 + $0xd]]
        %s1070 = sld [smem:[#allocation2 + $0x3e]]
        %v1071 = vstv %s1069
        %v1072 = vstv %s1070
        %v1073 = vsel %vm224, %v1071, %v1072
        %1074 = vrot.lane.b32.xlu0 %v220, 29
        %v1075 = vpop.permute.xlu0 %1074
        %1076 = vrot.lane.b32.xlu0 %v221, 29
        %v1077 = vpop.permute.xlu0 %1076
        %1078 = vrot.lane.b32.xlu0 0.0, 29
        %v1079 = vpop.permute.xlu0 %1078
        %vm1080 = vcmp.lt.s32.totalorder %v226, 29
        %v1081 = vsel %vm1080, %v1075, %v1077
        %v1082 = vsel %vm1080, %v1079, %v1075
        %v1083 = vmul.f32 %v1073, %v1082
        %v1084 = vmul.f32 %v1073, %v1081
        %v1085 = vadd.f32 %v1083, 0.0
        %v1086 = vadd.f32 %v1084, 0.0
        %s1087 = sld [smem:[#allocation2 + $0x14]]
        %s1088 = sld [smem:[#allocation2 + $0x45]]
        %v1089 = vstv %s1087
        %v1090 = vstv %s1088
        %v1091 = vsel %vm224, %v1089, %v1090
        %1092 = vrot.lane.b32.xlu0 %v220, 13
        %v1093 = vpop.permute.xlu0 %1092
        %1094 = vrot.lane.b32.xlu0 %v221, 13
        %v1095 = vpop.permute.xlu0 %1094
        %1096 = vrot.lane.b32.xlu0 0.0, 13
        %v1097 = vpop.permute.xlu0 %1096
        %vm1098 = vcmp.lt.s32.totalorder %v226, 13
        %v1099 = vsel %vm1098, %v1093, %v1095
        %v1100 = vsel %vm1098, %v1097, %v1093
        %v1101 = vmul.f32 %v1091, %v1100
        %v1102 = vmul.f32 %v1091, %v1099
        %v1103 = vadd.f32 %v1067, %v1101
        %v1104 = vadd.f32 %v1068, %v1102
        %s1105 = sld [smem:[#allocation2 + $0x1b]]
        %s1106 = sld [smem:[#allocation2 + $0x4c]]
        %v1107 = vstv %s1105
        %v1108 = vstv %s1106
        %v1109 = vsel %vm224, %v1107, %v1108
        %1110 = vrot.lane.b32.xlu0 %v220, 125
        %v1111 = vpop.permute.xlu0 %1110
        %1112 = vrot.lane.b32.xlu0 %v221, 125
        %v1113 = vpop.permute.xlu0 %1112
        %1114 = vrot.lane.b32.xlu0 0.0, 125
        %v1115 = vpop.permute.xlu0 %1114
        %vm1116 = vcmp.lt.s32.totalorder %v226, 125
        %v1117 = vsel %vm1116, %v1113, %v1115
        %v1118 = vsel %vm1116, %v1111, %v1113
        %v1119 = vmul.f32 %v1109, %v1118
        %v1120 = vmul.f32 %v1109, %v1117
        %v1121 = vadd.f32 %v1085, %v1119
        %v1122 = vadd.f32 %v1086, %v1120
        %s1123 = sld [smem:[#allocation2 + $0x22]]
        %s1124 = sld [smem:[#allocation2 + $0x53]]
        %v1125 = vstv %s1123
        %v1126 = vstv %s1124
        %v1127 = vsel %vm224, %v1125, %v1126
        %1128 = vrot.lane.b32.xlu0 %v220, 109
        %v1129 = vpop.permute.xlu0 %1128
        %1130 = vrot.lane.b32.xlu0 %v221, 109
        %v1131 = vpop.permute.xlu0 %1130
        %1132 = vrot.lane.b32.xlu0 0.0, 109
        %v1133 = vpop.permute.xlu0 %1132
        %vm1134 = vcmp.lt.s32.totalorder %v226, 109
        %v1135 = vsel %vm1134, %v1131, %v1133
        %v1136 = vsel %vm1134, %v1129, %v1131
        %v1137 = vmul.f32 %v1127, %v1136
        %v1138 = vmul.f32 %v1127, %v1135
        %v1139 = vadd.f32 %v1103, %v1137
        %v1140 = vadd.f32 %v1104, %v1138
        %s1141 = sld [smem:[#allocation2 + $0x29]]
        %s1142 = sld [smem:[#allocation2 + $0x5a]]
        %v1143 = vstv %s1141
        %v1144 = vstv %s1142
        %v1145 = vsel %vm224, %v1143, %v1144
        %1146 = vrot.lane.b32.xlu0 %v220, 93
        %v1147 = vpop.permute.xlu0 %1146
        %1148 = vrot.lane.b32.xlu0 %v221, 93
        %v1149 = vpop.permute.xlu0 %1148
        %1150 = vrot.lane.b32.xlu0 0.0, 93
        %v1151 = vpop.permute.xlu0 %1150
        %vm1152 = vcmp.lt.s32.totalorder %v226, 93
        %v1153 = vsel %vm1152, %v1149, %v1151
        %v1154 = vsel %vm1152, %v1147, %v1149
        %v1155 = vmul.f32 %v1145, %v1154
        %v1156 = vmul.f32 %v1145, %v1153
        %v1157 = vadd.f32 %v1121, %v1155
        %v1158 = vadd.f32 %v1122, %v1156
        %s1159 = sld [smem:[#allocation2 + $0x30]]
        %s1160 = sld [smem:[#allocation2 + $0x61]]
        %v1161 = vstv %s1159
        %v1162 = vstv %s1160
        %v1163 = vsel %vm224, %v1161, %v1162
        %1164 = vrot.lane.b32.xlu0 %v220, 77
        %v1165 = vpop.permute.xlu0 %1164
        %1166 = vrot.lane.b32.xlu0 %v221, 77
        %v1167 = vpop.permute.xlu0 %1166
        %1168 = vrot.lane.b32.xlu0 0.0, 77
        %v1169 = vpop.permute.xlu0 %1168
        %vm1170 = vcmp.lt.s32.totalorder %v226, 77
        %v1171 = vsel %vm1170, %v1167, %v1169
        %v1172 = vsel %vm1170, %v1165, %v1167
        %v1173 = vmul.f32 %v1163, %v1172
        %v1174 = vmul.f32 %v1163, %v1171
        %v1175 = vadd.f32 %v1139, %v1173
        %v1176 = vadd.f32 %v1140, %v1174
        %v1177 = vadd.f32 %v1175, %v1157
        %v1178 = vadd.f32 %v1176, %v1158
        %vm1179 = vcmp.ge.s32.totalorder %v250, 4294967293
        %vm1180 = vcmp.ge.s32.totalorder %v251, 4294967293
        %vm1181 = vcmp.lt.s32.totalorder %v250, 13
        %vm1182 = vcmp.lt.s32.totalorder %v251, 13
        %vm1183 = vmand %vm1179, %vm1181
        %vm1184 = vmand %vm1180, %vm1182
        %v1185 = vsel %vm1183, %v1177, 0.0
        %v1186 = vsel %vm1184, %v1178, 0.0
        %v1187 = vadd.f32 %v386, %v522
        %v1188 = vadd.f32 %v387, %v523
        %v1189 = vadd.f32 %v658, %v777
        %v1190 = vadd.f32 %v659, %v778
        %v1191 = vadd.f32 %v913, %v1049
        %v1192 = vadd.f32 %v914, %v1050
        %v1193 = vadd.f32 %v1187, %v1189
        %v1194 = vadd.f32 %v1188, %v1190
        %v1195 = vadd.f32 %v1191, %v1185
        %v1196 = vadd.f32 %v1192, %v1186
        %v1197 = vadd.f32 %v1193, %v1195
        %v1198 = vadd.f32 %v1194, %v1196
        %v1201 = vrot.slane %v1197, 1
        %v1202 = vrot.slane %v1198, 1
        %v1205 = vadd.f32 %v1197, %v1201
        %v1206 = vadd.f32 %v1198, %v1202
        %v1207 = vxor.u32 %v1205, 2147483648
        %v1208 = vxor.u32 %v1206, 2147483648
        %v1209 = vmul.f32 %v1207, 1.442695
        %v1210 = vpow.pop %v1209
        %v1211 = vmul.f32 %v1208, 1.442695
        %v1212 = vpow.pop %v1211
        %v1213 = vadd.f32 %v1210, 1.0
        %v1214 = vadd.f32 %v1212, 1.0
        %v1215 = vrcp.pop %v1213
        %v1216 = vmul.f32 %v1213, %v1215
        %v1217 = vsub.f32 1.0, %v1216
        %v1218 = vmul.f32 %v1215, %v1217
        %v1219 = vadd.f32 %v1215, %v1218
        %vm1220 = vweird.f32 %v1213
        %vm1221 = vweird.f32 %v1215
        %vm1222 = vmor %vm1220, %vm1221
        %v1223 = vsel %vm1222, %v1215, %v1219
        %v1224 = vand.u32 2147483647, %v1213
        %vm1225 = vcmp.eq.f32.partialorder %v1224, 8.507059e+37
        %v1226 = vand.u32 %v1213, 2147483648
        %v1227 = vor.u32 1.1754944e-38, %v1226
        %v1228 = vsel %vm1225, %v1227, %v1223
        %v1229 = vmul.f32 1.0, %v1228
        %v1230 = vrcp.pop %v1214
        %v1231 = vmul.f32 %v1214, %v1230
        %v1232 = vsub.f32 1.0, %v1231
        %v1233 = vmul.f32 %v1230, %v1232
        %v1234 = vadd.f32 %v1230, %v1233
        %vm1235 = vweird.f32 %v1214
        %vm1236 = vweird.f32 %v1230
        %vm1237 = vmor %vm1235, %vm1236
        %v1238 = vsel %vm1237, %v1230, %v1234
        %v1239 = vand.u32 2147483647, %v1214
        %vm1240 = vcmp.eq.f32.partialorder %v1239, 8.507059e+37
        %v1241 = vand.u32 %v1214, 2147483648
        %v1242 = vor.u32 1.1754944e-38, %v1241
        %v1243 = vsel %vm1240, %v1242, %v1238
        %v1244 = vmul.f32 1.0, %v1243
        %v1247 = vrot.slane %v1244, 7
        %v1248 = vsel %vm219, %v1229, %v1247
        %v1250 = vlaneseq
        %vm1251 = vcmp.ge.s32.totalorder %v1250, 0
        %vm1252 = vcmp.lt.s32.totalorder %v1250, 256
        %vm1253 = vmand %vm1251, %vm1252
        %1254 = vst.msk [vmem:[%s175] sm:$0x3] %vm1253, %v1248
        %s1255 = sand.u32 %s75, 1
        %s1256 = scalar_lea.sflag [#allocation4], %s1255
        %s1257 = sand.u32 %s75, 1
        %s1258 = smul.addr %s1257, 2
        %s1259 = scalar_lea.vmem [#allocation7], %s1258
        // Predicated region
        $region37: #{tpu_custom_call.1} parent=27 // pred_check
          %p1260 = pneg %p85
        $region38: #{tpu_custom_call.1} parent=27 // pred_check_branch
          %1262 = sbr.rel (%p1260) target = $region40
        $region39: #{tpu_custom_call.1} parent=27 // pred_region
          %1264 = vsyncadd %s1256, 0
          %s1265 = smul.addr %s20, 2
          %s1266 = scalar_lea.hbm %s2, %s1265
          %s1268 = sshll.u32 %s1259, 4
          %s1269 = int_to_ptr.vmem [resolvable:$true] %s1268
          %s1270 = sshll.u32 %s1266, 4
          %s1271 = int_to_ptr.hbm [resolvable:$true] %s1270
          %1273 = dma.vmem_to_hbm [thread:$0]  %s1269, 32, %s1271, %s1256
        $region40: #{tpu_custom_call.1} parent=27 // pred_fallthru
          _
      $region28: #{tpu_custom_call.1} parent=5 // pred_fallthru
        _
      %p1274 = scmp.le.s32.totalorder 2, %s15
      // Predicated region
      $region41: #{tpu_custom_call.1} parent=5 // pred_check
        %p1275 = pneg %p1274
      $region42: #{tpu_custom_call.1} parent=5 // pred_check_branch
        %1277 = sbr.rel (%p1275) target = $region44
      $region43: #{tpu_custom_call.1} parent=5 // pred_region
        %s1278 = ssub.s32 %s15, 2
        // Predicated region
        $region45: #{tpu_custom_call.1} parent=43 // pred_check
          %p1279 = pneg %p91
        $region46: #{tpu_custom_call.1} parent=43 // pred_check_branch
          %1281 = sbr.rel (%p1279) target = $region48
        $region47: #{tpu_custom_call.1} parent=43 // pred_region
          %s1282 = sand.u32 %s76, 1
          %s1283 = scalar_lea.sflag [#allocation4], %s1282
          %s1284 = sand.u32 %s76, 1
          %s1285 = smul.addr %s1284, 2
          %s1286 = scalar_lea.vmem [#allocation7], %s1285
          %1288 = dma.done %s1283, 32
        $region48: #{tpu_custom_call.1} parent=43 // pred_fallthru
          _
      $region44: #{tpu_custom_call.1} parent=5 // pred_fallthru
        _
    $region6: #{tpu_custom_call.1} parent=1 // loop_footer
      %s19 = sadd.s32 1, %s15
    $region7: #{tpu_custom_call.1} parent=1 // loop_footer_branch
      %14 = sbr.rel target = $region3
    $region8: #{tpu_custom_call.1} parent=1 // loop_exit
      _
    %1289 = vsyncpa [#allocation3], 1
    %s1290 = scalar_lea.sflag [#allocation3], 1
    %1291 = vsyncpa %s1290, 1
    %1292 = vsyncpa [#allocation4], 1
    %s1293 = scalar_lea.sflag [#allocation4], 1
    %1294 = vsyncpa %s1293, 1
    %1295 = vsyncpa [#allocation5], 1
    %s1296 = scalar_lea.sflag [#allocation5], 1
    %1297 = vsyncpa %s1296, 1

</llo_original>
